<compile_context>
chip_gen: v7x
topology: tpu7x:2x2x1
jax: 0.10.0
libtpu: 0.0.40
codegen_flags: <defaults>
</compile_context>

<pallas_src>
import jax
import jax.numpy as jnp
from jax import lax
from jax.experimental import pallas as pl
from jax.experimental.pallas import tpu as pltpu


def _round_up(x, m):
    return (x + m - 1) // m * m


def bottleneck_residual_block(x, ws, bs, w1, b1, w1b, b1b, w2):
    """BottleneckResidualBlock forward (resample=None, norm=None, mc_dropout=0).

    x   : (N, Cin, H, W) float32, NCHW
    ws  : (Cout, Cin, 1, 1), bs: (Cout,)            -- shortcut 1x1 conv
    w1  : (Cin//2, Cin, 1, 1), b1: (Cin//2,)        -- conv1 (1x1)
    w1b : (Cout//2, Cin//2, 3, 3), b1b: (Cout//2,)  -- conv1b (3x3, pad=1)
    w2  : (Cout, Cout//2, 1, 1)                     -- conv2 (1x1, no bias)
    """
    N, Cin, H, W = x.shape
    Cout = ws.shape[0]
    Cmid = w1.shape[0]
    Cmid2 = w1b.shape[0]
    assert ws.shape == (Cout, Cin, 1, 1)
    assert w1.shape == (Cmid, Cin, 1, 1)
    assert w1b.shape == (Cmid2, Cmid, 3, 3)
    assert w2.shape == (Cout, Cmid2, 1, 1)

    Hp, Wp = H + 2, W + 2              # spatially padded extents (pad=1)
    PF = Hp * Wp                       # padded image flattened onto lanes
    B = Wp + 1                         # lane offset of padded-flat position 0
    OUT_L = _round_up(H * Wp + W + 1, 128)                     # lane-dense output
    L = _round_up(max(B + PF, B + OUT_L + Wp + 1), 128)        # input buffer lanes

    cdt = jnp.bfloat16
    ws2 = ws.reshape(Cout, Cin).astype(cdt)
    w12 = w1.reshape(Cmid, Cin).astype(cdt)
    w22 = w2.reshape(Cout, Cmid2).astype(cdt)
    # (kh, kw, o, c) -> (9, Cout//2, Cin//2); tap index k = kh*3 + kw
    w1b9 = jnp.transpose(w1b, (2, 3, 0, 1)).reshape(9, Cmid2, Cmid).astype(cdt)
    bs2 = bs.reshape(Cout, 1).astype(jnp.float32)
    b12 = b1.reshape(Cmid, 1).astype(jnp.float32)
    b1b2 = b1b.reshape(Cmid2, 1).astype(jnp.float32)

    # x, spatially zero-padded, flattened onto lanes [B, B+PF) of an L-lane
    # buffer (rest zero).  Only ~1.3x inflation instead of 9x im2col.
    xp = jnp.pad(x, ((0, 0), (0, 0), (1, 1), (1, 1))).reshape(N, Cin, PF)
    xbuf = jnp.zeros((N, Cin, L), cdt).at[:, :, B:B + PF].set(xp.astype(cdt))

    # interior mask: 1.0 exactly at lanes holding a real (non-padding) pixel.
    p = jnp.arange(PF)
    r, c = p // Wp, p % Wp
    interior = ((r >= 1) & (r <= H) & (c >= 1) & (c <= W)).astype(jnp.float32)
    mask = jnp.zeros((1, L), jnp.float32).at[0, B:B + PF].set(interior)

    # lane offsets of the 9 taps of the 3x3 conv in the padded-flat layout
    offs = [(kh - 1) * Wp + (kw - 1) for kh in range(3) for kw in range(3)]

    def kernel(x_ref, m_ref, ws_ref, bs_ref, w1_ref, b1_ref, w1b_ref, b1b_ref,
               w2_ref, out_ref, h1_ref):
        x_b = x_ref[...]                                      # (Cin, L) bf16

        # shortcut 1x1 conv on the raw (pre-activation) input, output window only
        xs = x_ref[:, B:B + OUT_L]                            # (Cin, OUT_L)
        shortcut = jnp.dot(ws_ref[...], xs,
                           preferred_element_type=jnp.float32) + bs_ref[...]

        # conv1 (1x1) + ReLU over the whole padded buffer; the mask zeroes the
        # padding ring (and the unused tail) so h1 has exact zero padding.
        a = jnp.maximum(x_b, 0)
        h1 = jnp.dot(w1_ref[...], a,
                     preferred_element_type=jnp.float32) + b1_ref[...]
        h1 = jnp.maximum(h1, 0.0) * m_ref[...]                # (Cmid, L) f32
        h1_ref[...] = h1

        # conv1b (3x3, pad=1) = 9 lane-shifted accumulating matmuls in VMEM
        acc = jnp.zeros((Cmid2, OUT_L), jnp.float32)
        for k, off in enumerate(offs):
            s = B + off                                       # static, >= 0
            acc = acc + jnp.dot(w1b_ref[k].astype(jnp.float32),
                                h1_ref[:, s:s + OUT_L],
                                preferred_element_type=jnp.float32)
        h2 = jnp.maximum(acc + b1b_ref[...], 0.0)             # (Cmid2, OUT_L)

        # conv2 (1x1, no bias) + residual combine
        body = jnp.dot(w2_ref[...].astype(jnp.float32), h2,
                       preferred_element_type=jnp.float32)    # (Cout, OUT_L)
        out_ref[...] = (shortcut + 0.3 * body).astype(out_ref.dtype)

    flops = 2 * N * (Cmid * Cin * L
                     + Cout * Cin * OUT_L
                     + 9 * Cmid2 * Cmid * OUT_L
                     + Cout * Cmid2 * OUT_L)
    bytes_accessed = (xbuf.size * 2 + mask.size * 4
                      + (ws2.size + w12.size + w22.size + w1b9.size) * 2
                      + (bs2.size + b12.size + b1b2.size) * 4
                      + N * Cout * OUT_L * 4)

    out_flat = pl.pallas_call(
        kernel,
        out_shape=jax.ShapeDtypeStruct((N, Cout, OUT_L), jnp.float32),
        grid_spec=pltpu.PrefetchScalarGridSpec(
            num_scalar_prefetch=0,
            grid=(N,),
            in_specs=[
                pl.BlockSpec((None, Cin, L), lambda n: (n, 0, 0)),
                pl.BlockSpec((1, L), lambda n: (0, 0)),
                pl.BlockSpec((Cout, Cin), lambda n: (0, 0)),
                pl.BlockSpec((Cout, 1), lambda n: (0, 0)),
                pl.BlockSpec((Cmid, Cin), lambda n: (0, 0)),
                pl.BlockSpec((Cmid, 1), lambda n: (0, 0)),
                pl.BlockSpec((9, Cmid2, Cmid), lambda n: (0, 0, 0)),
                pl.BlockSpec((Cmid2, 1), lambda n: (0, 0)),
                pl.BlockSpec((Cout, Cmid2), lambda n: (0, 0)),
            ],
            out_specs=pl.BlockSpec((None, Cout, OUT_L), lambda n: (n, 0, 0)),
            scratch_shapes=[pltpu.VMEM((Cmid, L), jnp.float32)],
        ),
        compiler_params=pltpu.CompilerParams(
            dimension_semantics=("parallel",)),
        cost_estimate=pl.CostEstimate(flops=flops, transcendentals=0,
                                      bytes_accessed=bytes_accessed),
    )(xbuf, mask, ws2, bs2, w12, b12, w1b9, b1b2, w22)

    # lane t of the output window is padded-flat position t; keep the interior.
    out_pad = out_flat[:, :, :PF].reshape(N, Cout, Hp, Wp)
    return out_pad[:, :, 1:H + 1, 1:W + 1]


def _reference(x, ws, bs, w1, b1, w1b, b1b, w2):
    # Pure-JAX reference on the same bf16-quantized operands the kernel sees.
    q = lambda a: a.astype(jnp.bfloat16).astype(jnp.float32)
    relu = lambda a: jnp.maximum(a, 0.0)

    def conv(h, w, pad):
        return lax.conv_general_dilated(
            h, w, (1, 1), [(pad, pad), (pad, pad)],
            dimension_numbers=("NCHW", "OIHW", "NCHW"),
            precision=lax.Precision.HIGHEST)

    xq = q(x)
    shortcut = conv(xq, q(ws), 0) + bs.reshape(1, -1, 1, 1)
    h = relu(xq)
    h = relu(conv(h, q(w1), 0) + b1.reshape(1, -1, 1, 1))
    h = relu(conv(h, q(w1b), 1) + b1b.reshape(1, -1, 1, 1))
    h = conv(h, q(w2), 0)
    return shortcut + 0.3 * h


if __name__ == "__main__":
    # BottleneckResidualBlock(in_channels=4, out_channels=8) default path.
    N, Cin, Cout, H, W = 2, 4, 8, 16, 16
    Cmid, Cmid2 = Cin // 2, Cout // 2
    key = jax.random.PRNGKey(0)
    ks = jax.random.split(key, 8)

    def u(k, shape, fan_in):
        b = 1.0 / (fan_in ** 0.5)   # PyTorch-style uniform init bound
        return jax.random.uniform(k, shape, jnp.float32, -b, b)

    x = jax.random.normal(ks[0], (N, Cin, H, W), dtype=jnp.float32)
    ws = u(ks[1], (Cout, Cin, 1, 1), Cin)
    bs = u(ks[2], (Cout,), Cin)
    w1 = u(ks[3], (Cmid, Cin, 1, 1), Cin)
    b1 = u(ks[4], (Cmid,), Cin)
    w1b = u(ks[5], (Cmid2, Cmid, 3, 3), Cmid * 9)
    b1b = u(ks[6], (Cmid2,), Cmid * 9)
    w2 = u(ks[7], (Cout, Cmid2, 1, 1), Cmid2)

    out = bottleneck_residual_block(x, ws, bs, w1, b1, w1b, b1b, w2)
    out = jax.block_until_ready(out)

    ref = _reference(x, ws, bs, w1, b1, w1b, b1b, w2)
    assert out.shape == (N, Cout, H, W), out.shape
    err = float(jnp.max(jnp.abs(out - ref)))
    assert jnp.allclose(out, ref, atol=2e-3, rtol=2e-3), err

    print("KERNEL_OK")
</pallas_src>

<mosaic_0001>
module attributes {stable_mosaic.version = 11 : i64} {
  func.func @kernel(%arg0: i32, %arg1: memref<1x4x512xbf16, #tpu.memory_space<vmem>>, %arg2: memref<1x512xf32, #tpu.memory_space<vmem>>, %arg3: memref<8x4xbf16, #tpu.memory_space<vmem>>, %arg4: memref<8x1xf32, #tpu.memory_space<vmem>>, %arg5: memref<2x4xbf16, #tpu.memory_space<vmem>>, %arg6: memref<2x1xf32, #tpu.memory_space<vmem>>, %arg7: memref<9x4x2xbf16, #tpu.memory_space<vmem>>, %arg8: memref<4x1xf32, #tpu.memory_space<vmem>>, %arg9: memref<8x4xbf16, #tpu.memory_space<vmem>>, %arg10: memref<1x8x384xf32, #tpu.memory_space<vmem>>, %arg11: memref<2x512xf32, #tpu.memory_space<vmem>>) attributes {dimension_semantics = [#tpu.dimension_semantics<parallel>], iteration_bounds = array<i64: 2>, scalar_prefetch = 0 : i64, scratch_operands = 1 : i64, tpu.core_type = #tpu.core_type<tc>, window_params = [{transform_indices = @transform_0, window_bounds = array<i64: 1, 4, 512>}, {pipeline_mode = #tpu.pipeline_mode<synchronous>, transform_indices = @transform_1, window_bounds = array<i64: 1, 512>}, {pipeline_mode = #tpu.pipeline_mode<synchronous>, transform_indices = @transform_2, window_bounds = array<i64: 8, 4>}, {pipeline_mode = #tpu.pipeline_mode<synchronous>, transform_indices = @transform_3, window_bounds = array<i64: 8, 1>}, {pipeline_mode = #tpu.pipeline_mode<synchronous>, transform_indices = @transform_4, window_bounds = array<i64: 2, 4>}, {pipeline_mode = #tpu.pipeline_mode<synchronous>, transform_indices = @transform_5, window_bounds = array<i64: 2, 1>}, {pipeline_mode = #tpu.pipeline_mode<synchronous>, transform_indices = @transform_6, window_bounds = array<i64: 9, 4, 2>}, {pipeline_mode = #tpu.pipeline_mode<synchronous>, transform_indices = @transform_7, window_bounds = array<i64: 4, 1>}, {pipeline_mode = #tpu.pipeline_mode<synchronous>, transform_indices = @transform_8, window_bounds = array<i64: 8, 4>}, {transform_indices = @transform_9, window_bounds = array<i64: 1, 8, 384>}]} {
    %c0 = arith.constant 0 : index
    %c0_0 = arith.constant 0 : index
    %c0_1 = arith.constant 0 : index
    %0 = vector.load %arg1[%c0, %c0_0, %c0_1] : memref<1x4x512xbf16, #tpu.memory_space<vmem>>, vector<1x4x512xbf16>
    %1 = vector.shape_cast %0 : vector<1x4x512xbf16> to vector<4x512xbf16>
    %c0_2 = arith.constant 0 : index
    %c0_3 = arith.constant 0 : index
    %c19 = arith.constant 19 : index
    %2 = vector.load %arg1[%c0_2, %c0_3, %c19] : memref<1x4x512xbf16, #tpu.memory_space<vmem>>, vector<1x4x384xbf16>
    %3 = vector.shape_cast %2 : vector<1x4x384xbf16> to vector<4x384xbf16>
    %c0_4 = arith.constant 0 : index
    %c0_5 = arith.constant 0 : index
    %4 = vector.load %arg3[%c0_4, %c0_5] : memref<8x4xbf16, #tpu.memory_space<vmem>>, vector<8x4xbf16>
    %cst = arith.constant dense<0.000000e+00> : vector<8x384xf32>
    %5 = tpu.matmul %4, %3, %cst {dimension_numbers = #tpu.dot_dimension_numbers<[1], [0], [0], [1], [0, 0, 1, 1], [], []>} : vector<8x4xbf16>, vector<4x384xbf16>, vector<8x384xf32> -> vector<8x384xf32>
    %c0_6 = arith.constant 0 : index
    %c0_7 = arith.constant 0 : index
    %6 = vector.load %arg4[%c0_6, %c0_7] : memref<8x1xf32, #tpu.memory_space<vmem>>, vector<8x1xf32>
    %7 = vector.broadcast %6 : vector<8x1xf32> to vector<8x384xf32>
    %8 = arith.addf %5, %7 : vector<8x384xf32>
    %cst_8 = arith.constant 0.000000e+00 : bf16
    %9 = vector.broadcast %cst_8 : bf16 to vector<4x512xbf16>
    %10 = arith.maximumf %1, %9 : vector<4x512xbf16>
    %c0_9 = arith.constant 0 : index
    %c0_10 = arith.constant 0 : index
    %11 = vector.load %arg5[%c0_9, %c0_10] : memref<2x4xbf16, #tpu.memory_space<vmem>>, vector<2x4xbf16>
    %cst_11 = arith.constant dense<0.000000e+00> : vector<2x512xf32>
    %12 = tpu.matmul %11, %10, %cst_11 {dimension_numbers = #tpu.dot_dimension_numbers<[1], [0], [0], [1], [0, 0, 1, 1], [], []>} : vector<2x4xbf16>, vector<4x512xbf16>, vector<2x512xf32> -> vector<2x512xf32>
    %c0_12 = arith.constant 0 : index
    %c0_13 = arith.constant 0 : index
    %13 = vector.load %arg6[%c0_12, %c0_13] : memref<2x1xf32, #tpu.memory_space<vmem>>, vector<2x1xf32>
    %14 = vector.broadcast %13 : vector<2x1xf32> to vector<2x512xf32>
    %15 = arith.addf %12, %14 : vector<2x512xf32>
    %cst_14 = arith.constant 0.000000e+00 : f32
    %16 = vector.broadcast %cst_14 : f32 to vector<2x512xf32>
    %17 = arith.maximumf %15, %16 : vector<2x512xf32>
    %c0_15 = arith.constant 0 : index
    %c0_16 = arith.constant 0 : index
    %18 = vector.load %arg2[%c0_15, %c0_16] : memref<1x512xf32, #tpu.memory_space<vmem>>, vector<1x512xf32>
    %19 = vector.broadcast %18 : vector<1x512xf32> to vector<2x512xf32>
    %20 = arith.mulf %17, %19 : vector<2x512xf32>
    %c0_17 = arith.constant 0 : index
    %c0_18 = arith.constant 0 : index
    %21 = vector.load %arg11[%c0_17, %c0_18] : memref<2x512xf32, #tpu.memory_space<vmem>>, vector<2x512xf32>
    tpu.vector_store %arg11[%c0_17, %c0_18], %20 {strides = array<i32>} : memref<2x512xf32, #tpu.memory_space<vmem>>, vector<2x512xf32>,
    %cst_19 = arith.constant 0.000000e+00 : f32
    %22 = vector.broadcast %cst_19 : f32 to vector<4x384xf32>
    %c0_20 = arith.constant 0 : index
    %c0_21 = arith.constant 0 : index
    %c0_22 = arith.constant 0 : index
    %23 = vector.load %arg7[%c0_20, %c0_21, %c0_22] : memref<9x4x2xbf16, #tpu.memory_space<vmem>>, vector<1x4x2xbf16>
    %24 = vector.shape_cast %23 : vector<1x4x2xbf16> to vector<4x2xbf16>
    %25 = arith.extf %24 : vector<4x2xbf16> to vector<4x2xf32>
    %c0_23 = arith.constant 0 : index
    %c0_24 = arith.constant 0 : index
    %26 = vector.load %arg11[%c0_23, %c0_24] : memref<2x512xf32, #tpu.memory_space<vmem>>, vector<2x384xf32>
    %cst_25 = arith.constant dense<0.000000e+00> : vector<4x384xf32>
    %27 = tpu.matmul %25, %26, %cst_25 {dimension_numbers = #tpu.dot_dimension_numbers<[1], [0], [0], [1], [0, 0, 1, 1], [], []>} : vector<4x2xf32>, vector<2x384xf32>, vector<4x384xf32> -> vector<4x384xf32>
    %28 = arith.addf %22, %27 : vector<4x384xf32>
    %c1 = arith.constant 1 : index
    %c0_26 = arith.constant 0 : index
    %c0_27 = arith.constant 0 : index
    %29 = vector.load %arg7[%c1, %c0_26, %c0_27] : memref<9x4x2xbf16, #tpu.memory_space<vmem>>, vector<1x4x2xbf16>
    %30 = vector.shape_cast %29 : vector<1x4x2xbf16> to vector<4x2xbf16>
    %31 = arith.extf %30 : vector<4x2xbf16> to vector<4x2xf32>
    %c0_28 = arith.constant 0 : index
    %c1_29 = arith.constant 1 : index
    %32 = vector.load %arg11[%c0_28, %c1_29] : memref<2x512xf32, #tpu.memory_space<vmem>>, vector<2x384xf32>
    %cst_30 = arith.constant dense<0.000000e+00> : vector<4x384xf32>
    %33 = tpu.matmul %31, %32, %cst_30 {dimension_numbers = #tpu.dot_dimension_numbers<[1], [0], [0], [1], [0, 0, 1, 1], [], []>} : vector<4x2xf32>, vector<2x384xf32>, vector<4x384xf32> -> vector<4x384xf32>
    %34 = arith.addf %28, %33 : vector<4x384xf32>
    %c2 = arith.constant 2 : index
    %c0_31 = arith.constant 0 : index
    %c0_32 = arith.constant 0 : index
    %35 = vector.load %arg7[%c2, %c0_31, %c0_32] : memref<9x4x2xbf16, #tpu.memory_space<vmem>>, vector<1x4x2xbf16>
    %36 = vector.shape_cast %35 : vector<1x4x2xbf16> to vector<4x2xbf16>
    %37 = arith.extf %36 : vector<4x2xbf16> to vector<4x2xf32>
    %c0_33 = arith.constant 0 : index
    %c2_34 = arith.constant 2 : index
    %38 = vector.load %arg11[%c0_33, %c2_34] : memref<2x512xf32, #tpu.memory_space<vmem>>, vector<2x384xf32>
    %cst_35 = arith.constant dense<0.000000e+00> : vector<4x384xf32>
    %39 = tpu.matmul %37, %38, %cst_35 {dimension_numbers = #tpu.dot_dimension_numbers<[1], [0], [0], [1], [0, 0, 1, 1], [], []>} : vector<4x2xf32>, vector<2x384xf32>, vector<4x384xf32> -> vector<4x384xf32>
    %40 = arith.addf %34, %39 : vector<4x384xf32>
    %c3 = arith.constant 3 : index
    %c0_36 = arith.constant 0 : index
    %c0_37 = arith.constant 0 : index
    %41 = vector.load %arg7[%c3, %c0_36, %c0_37] : memref<9x4x2xbf16, #tpu.memory_space<vmem>>, vector<1x4x2xbf16>
    %42 = vector.shape_cast %41 : vector<1x4x2xbf16> to vector<4x2xbf16>
    %43 = arith.extf %42 : vector<4x2xbf16> to vector<4x2xf32>
    %c0_38 = arith.constant 0 : index
    %c18 = arith.constant 18 : index
    %44 = vector.load %arg11[%c0_38, %c18] : memref<2x512xf32, #tpu.memory_space<vmem>>, vector<2x384xf32>
    %cst_39 = arith.constant dense<0.000000e+00> : vector<4x384xf32>
    %45 = tpu.matmul %43, %44, %cst_39 {dimension_numbers = #tpu.dot_dimension_numbers<[1], [0], [0], [1], [0, 0, 1, 1], [], []>} : vector<4x2xf32>, vector<2x384xf32>, vector<4x384xf32> -> vector<4x384xf32>
    %46 = arith.addf %40, %45 : vector<4x384xf32>
    %c4 = arith.constant 4 : index
    %c0_40 = arith.constant 0 : index
    %c0_41 = arith.constant 0 : index
    %47 = vector.load %arg7[%c4, %c0_40, %c0_41] : memref<9x4x2xbf16, #tpu.memory_space<vmem>>, vector<1x4x2xbf16>
    %48 = vector.shape_cast %47 : vector<1x4x2xbf16> to vector<4x2xbf16>
    %49 = arith.extf %48 : vector<4x2xbf16> to vector<4x2xf32>
    %c0_42 = arith.constant 0 : index
    %c19_43 = arith.constant 19 : index
    %50 = vector.load %arg11[%c0_42, %c19_43] : memref<2x512xf32, #tpu.memory_space<vmem>>, vector<2x384xf32>
    %cst_44 = arith.constant dense<0.000000e+00> : vector<4x384xf32>
    %51 = tpu.matmul %49, %50, %cst_44 {dimension_numbers = #tpu.dot_dimension_numbers<[1], [0], [0], [1], [0, 0, 1, 1], [], []>} : vector<4x2xf32>, vector<2x384xf32>, vector<4x384xf32> -> vector<4x384xf32>
    %52 = arith.addf %46, %51 : vector<4x384xf32>
    %c5 = arith.constant 5 : index
    %c0_45 = arith.constant 0 : index
    %c0_46 = arith.constant 0 : index
    %53 = vector.load %arg7[%c5, %c0_45, %c0_46] : memref<9x4x2xbf16, #tpu.memory_space<vmem>>, vector<1x4x2xbf16>
    %54 = vector.shape_cast %53 : vector<1x4x2xbf16> to vector<4x2xbf16>
    %55 = arith.extf %54 : vector<4x2xbf16> to vector<4x2xf32>
    %c0_47 = arith.constant 0 : index
    %c20 = arith.constant 20 : index
    %56 = vector.load %arg11[%c0_47, %c20] : memref<2x512xf32, #tpu.memory_space<vmem>>, vector<2x384xf32>
    %cst_48 = arith.constant dense<0.000000e+00> : vector<4x384xf32>
    %57 = tpu.matmul %55, %56, %cst_48 {dimension_numbers = #tpu.dot_dimension_numbers<[1], [0], [0], [1], [0, 0, 1, 1], [], []>} : vector<4x2xf32>, vector<2x384xf32>, vector<4x384xf32> -> vector<4x384xf32>
    %58 = arith.addf %52, %57 : vector<4x384xf32>
    %c6 = arith.constant 6 : index
    %c0_49 = arith.constant 0 : index
    %c0_50 = arith.constant 0 : index
    %59 = vector.load %arg7[%c6, %c0_49, %c0_50] : memref<9x4x2xbf16, #tpu.memory_space<vmem>>, vector<1x4x2xbf16>
    %60 = vector.shape_cast %59 : vector<1x4x2xbf16> to vector<4x2xbf16>
    %61 = arith.extf %60 : vector<4x2xbf16> to vector<4x2xf32>
    %c0_51 = arith.constant 0 : index
    %c36 = arith.constant 36 : index
    %62 = vector.load %arg11[%c0_51, %c36] : memref<2x512xf32, #tpu.memory_space<vmem>>, vector<2x384xf32>
    %cst_52 = arith.constant dense<0.000000e+00> : vector<4x384xf32>
    %63 = tpu.matmul %61, %62, %cst_52 {dimension_numbers = #tpu.dot_dimension_numbers<[1], [0], [0], [1], [0, 0, 1, 1], [], []>} : vector<4x2xf32>, vector<2x384xf32>, vector<4x384xf32> -> vector<4x384xf32>
    %64 = arith.addf %58, %63 : vector<4x384xf32>
    %c7 = arith.constant 7 : index
    %c0_53 = arith.constant 0 : index
    %c0_54 = arith.constant 0 : index
    %65 = vector.load %arg7[%c7, %c0_53, %c0_54] : memref<9x4x2xbf16, #tpu.memory_space<vmem>>, vector<1x4x2xbf16>
    %66 = vector.shape_cast %65 : vector<1x4x2xbf16> to vector<4x2xbf16>
    %67 = arith.extf %66 : vector<4x2xbf16> to vector<4x2xf32>
    %c0_55 = arith.constant 0 : index
    %c37 = arith.constant 37 : index
    %68 = vector.load %arg11[%c0_55, %c37] : memref<2x512xf32, #tpu.memory_space<vmem>>, vector<2x384xf32>
    %cst_56 = arith.constant dense<0.000000e+00> : vector<4x384xf32>
    %69 = tpu.matmul %67, %68, %cst_56 {dimension_numbers = #tpu.dot_dimension_numbers<[1], [0], [0], [1], [0, 0, 1, 1], [], []>} : vector<4x2xf32>, vector<2x384xf32>, vector<4x384xf32> -> vector<4x384xf32>
    %70 = arith.addf %64, %69 : vector<4x384xf32>
    %c8 = arith.constant 8 : index
    %c0_57 = arith.constant 0 : index
    %c0_58 = arith.constant 0 : index
    %71 = vector.load %arg7[%c8, %c0_57, %c0_58] : memref<9x4x2xbf16, #tpu.memory_space<vmem>>, vector<1x4x2xbf16>
    %72 = vector.shape_cast %71 : vector<1x4x2xbf16> to vector<4x2xbf16>
    %73 = arith.extf %72 : vector<4x2xbf16> to vector<4x2xf32>
    %c0_59 = arith.constant 0 : index
    %c38 = arith.constant 38 : index
    %74 = vector.load %arg11[%c0_59, %c38] : memref<2x512xf32, #tpu.memory_space<vmem>>, vector<2x384xf32>
    %cst_60 = arith.constant dense<0.000000e+00> : vector<4x384xf32>
    %75 = tpu.matmul %73, %74, %cst_60 {dimension_numbers = #tpu.dot_dimension_numbers<[1], [0], [0], [1], [0, 0, 1, 1], [], []>} : vector<4x2xf32>, vector<2x384xf32>, vector<4x384xf32> -> vector<4x384xf32>
    %76 = arith.addf %70, %75 : vector<4x384xf32>
    %c0_61 = arith.constant 0 : index
    %c0_62 = arith.constant 0 : index
    %77 = vector.load %arg8[%c0_61, %c0_62] : memref<4x1xf32, #tpu.memory_space<vmem>>, vector<4x1xf32>
    %78 = vector.broadcast %77 : vector<4x1xf32> to vector<4x384xf32>
    %79 = arith.addf %76, %78 : vector<4x384xf32>
    %cst_63 = arith.constant 0.000000e+00 : f32
    %80 = vector.broadcast %cst_63 : f32 to vector<4x384xf32>
    %81 = arith.maximumf %79, %80 : vector<4x384xf32>
    %c0_64 = arith.constant 0 : index
    %c0_65 = arith.constant 0 : index
    %82 = vector.load %arg9[%c0_64, %c0_65] : memref<8x4xbf16, #tpu.memory_space<vmem>>, vector<8x4xbf16>
    %83 = arith.extf %82 : vector<8x4xbf16> to vector<8x4xf32>
    %cst_66 = arith.constant dense<0.000000e+00> : vector<8x384xf32>
    %84 = tpu.matmul %83, %81, %cst_66 {dimension_numbers = #tpu.dot_dimension_numbers<[1], [0], [0], [1], [0, 0, 1, 1], [], []>} : vector<8x4xf32>, vector<4x384xf32>, vector<8x384xf32> -> vector<8x384xf32>
    %cst_67 = arith.constant 3.000000e-01 : f32
    %85 = vector.broadcast %cst_67 : f32 to vector<8x384xf32>
    %86 = arith.mulf %85, %84 : vector<8x384xf32>
    %87 = arith.addf %8, %86 : vector<8x384xf32>
    %c0_68 = arith.constant 0 : index
    %c0_69 = arith.constant 0 : index
    %c0_70 = arith.constant 0 : index
    %88 = vector.load %arg10[%c0_68, %c0_69, %c0_70] : memref<1x8x384xf32, #tpu.memory_space<vmem>>, vector<1x8x384xf32>
    %89 = vector.shape_cast %88 : vector<1x8x384xf32> to vector<8x384xf32>
    %90 = vector.shape_cast %87 : vector<8x384xf32> to vector<1x8x384xf32>
    tpu.vector_store %arg10[%c0_68, %c0_69, %c0_70], %90 {strides = array<i32>} : memref<1x8x384xf32, #tpu.memory_space<vmem>>, vector<1x8x384xf32>,
    return
  }
  func.func @transform_0(%arg0: i32) -> (i32, i32, i32) {
    %c0_i32 = arith.constant 0 : i32
    %c0_i32_0 = arith.constant 0 : i32
    %c0_i32_1 = arith.constant 0 : i32
    return %arg0, %c0_i32, %c0_i32_0 : i32, i32, i32
  }
  func.func @transform_1(%arg0: i32) -> (i32, i32) {
    %c0_i32 = arith.constant 0 : i32
    %c0_i32_0 = arith.constant 0 : i32
    %c0_i32_1 = arith.constant 0 : i32
    return %c0_i32, %c0_i32_0 : i32, i32
  }
  func.func @transform_2(%arg0: i32) -> (i32, i32) {
    %c0_i32 = arith.constant 0 : i32
    %c0_i32_0 = arith.constant 0 : i32
    %c0_i32_1 = arith.constant 0 : i32
    return %c0_i32, %c0_i32_0 : i32, i32
  }
  func.func @transform_3(%arg0: i32) -> (i32, i32) {
    %c0_i32 = arith.constant 0 : i32
    %c0_i32_0 = arith.constant 0 : i32
    %c0_i32_1 = arith.constant 0 : i32
    return %c0_i32, %c0_i32_0 : i32, i32
  }
  func.func @transform_4(%arg0: i32) -> (i32, i32) {
    %c0_i32 = arith.constant 0 : i32
    %c0_i32_0 = arith.constant 0 : i32
    %c0_i32_1 = arith.constant 0 : i32
    return %c0_i32, %c0_i32_0 : i32, i32
  }
  func.func @transform_5(%arg0: i32) -> (i32, i32) {
    %c0_i32 = arith.constant 0 : i32
    %c0_i32_0 = arith.constant 0 : i32
    %c0_i32_1 = arith.constant 0 : i32
    return %c0_i32, %c0_i32_0 : i32, i32
  }
  func.func @transform_6(%arg0: i32) -> (i32, i32, i32) {
    %c0_i32 = arith.constant 0 : i32
    %c0_i32_0 = arith.constant 0 : i32
    %c0_i32_1 = arith.constant 0 : i32
    %c0_i32_2 = arith.constant 0 : i32
    return %c0_i32, %c0_i32_0, %c0_i32_1 : i32, i32, i32
  }
  func.func @transform_7(%arg0: i32) -> (i32, i32) {
    %c0_i32 = arith.constant 0 : i32
    %c0_i32_0 = arith.constant 0 : i32
    %c0_i32_1 = arith.constant 0 : i32
    return %c0_i32, %c0_i32_0 : i32, i32
  }
  func.func @transform_8(%arg0: i32) -> (i32, i32) {
    %c0_i32 = arith.constant 0 : i32
    %c0_i32_0 = arith.constant 0 : i32
    %c0_i32_1 = arith.constant 0 : i32
    return %c0_i32, %c0_i32_0 : i32, i32
  }
  func.func @transform_9(%arg0: i32) -> (i32, i32, i32) {
    %c0_i32 = arith.constant 0 : i32
    %c0_i32_0 = arith.constant 0 : i32
    %c0_i32_1 = arith.constant 0 : i32
    return %arg0, %c0_i32, %c0_i32_0 : i32, i32, i32
  }
}

</mosaic_0001>

<llo_original>
// kernel: tpu_custom_call.1
$region0: #{tpu_custom_call.1}
  #allocation0 [shape = 'u32[]', space=smem, size = 0x4, offset = 0x4, fixed_abs, tag = 'smem constant byte address 0x4 - core index']
  #allocation1 [shape = 'u32[144,128]{1,0:T(1,128)}', space=vmem, size = 0x12000, scoped, tag = 'internal scratch']
  #allocation2 [shape = 'f32[2,512]{1,0:T(2,128)}', space=vmem, size = 0x1000, scoped, tag = 'scratch operand']
  %s0 = inlined_call_operand.vmem [shape: bf16[2,4,512], index: 0, kind: input, shape index: {}]
  %s1 = inlined_call_operand.vmem [shape: f32[1,512], index: 1, kind: input, shape index: {}]
  %s2 = inlined_call_operand.vmem [shape: bf16[8,4], index: 2, kind: input, shape index: {}]
  %s3 = inlined_call_operand.vmem [shape: f32[8,1], index: 3, kind: input, shape index: {}]
  %s4 = inlined_call_operand.vmem [shape: bf16[2,4], index: 4, kind: input, shape index: {}]
  %s5 = inlined_call_operand.vmem [shape: f32[2,1], index: 5, kind: input, shape index: {}]
  %s6 = inlined_call_operand.vmem [shape: bf16[9,4,2], index: 6, kind: input, shape index: {}]
  %s7 = inlined_call_operand.vmem [shape: f32[4,1], index: 7, kind: input, shape index: {}]
  %s8 = inlined_call_operand.vmem [shape: bf16[8,4], index: 8, kind: input, shape index: {}]
  %s9 = inlined_call_operand.hbm [shape: f32[2,8,384], index: 9, kind: output, shape index: {}]
  %s10 = sld [smem:[#allocation0]]
  $region69: #{tpu_custom_call.1} parent=0
    _
  %s12 = ssub.s32 1, %s10
  %s13 = scalar_select 0, %s12, %s10
  $region1: #{tpu_custom_call.1} parent=0
    #allocation3 [shape = 'u8[24576]{0}', space=vmem, size = 0x6000, scoped, tag = 'output window, operand 0']
    #allocation4 [shape = 's32[2]{0}', space=sflag, size = 0x8, scoped, tag = 'scoped memory for tpu_custom_call.1']
    %14 = vsyncpa [#allocation4], 0
    %s15 = scalar_lea.sflag [#allocation4], 1
    %16 = vsyncpa %s15, 0
    loop: start=0, step=1, limit=4
    $region2: #{tpu_custom_call.1} parent=1 // loop_pre_header
      _
    $region3: #{tpu_custom_call.1} parent=1 // loop_header
      %s18 = sphi 0, %s22
      %p19 = scmp.ge.s32.totalorder %s18, 4
      %s28 = sphi 0, %s30
      %s31 = sphi 0, %s28
      %s32 = sphi 0, %s31
      %s48 = sphi 0, %s32
      %s52 = sphi 0, %s52
      %s54 = sphi 0, %s52
      %s55 = sphi 0, %s54
      %s69 = sphi 0, %s55
      %s73 = sphi 0, %s73
      %s75 = sphi 0, %s73
      %s76 = sphi 0, %s75
      %s90 = sphi 0, %s76
      %s94 = sphi 0, %s94
      %s96 = sphi 0, %s94
      %s97 = sphi 0, %s96
      %s111 = sphi 0, %s97
      %s115 = sphi 0, %s115
      %s117 = sphi 0, %s115
      %s118 = sphi 0, %s117
      %s132 = sphi 0, %s118
      %s136 = sphi 0, %s136
      %s138 = sphi 0, %s136
      %s139 = sphi 0, %s138
      %s153 = sphi 0, %s139
      %s157 = sphi 0, %s157
      %s159 = sphi 0, %s157
      %s160 = sphi 0, %s159
      %s174 = sphi 0, %s160
      %s178 = sphi 0, %s178
      %s180 = sphi 0, %s178
      %s181 = sphi 0, %s180
      %s195 = sphi 0, %s181
      %s199 = sphi 0, %s199
      %s201 = sphi 0, %s199
      %s202 = sphi 0, %s201
      %s216 = sphi 0, %s202
      %s222 = sphi 0, %s224
      %s225 = sphi 0, %s222
      %s226 = sphi 0, %s225
      %s242 = sphi 0, %s226
    $region4: #{tpu_custom_call.1} parent=1 // loop_header_branch
      %21 = sbr.rel (%p19) target = $region8
    $region5: #{tpu_custom_call.1} parent=1 // loop_body
      %s23 = ssub.s32 %s18, 1
      %s24 = ssub.s32 %s18, 2
      %s25 = sadd.s32 %s18, 1
      %s26 = ssub.s32 %s18, %s25
      %p27 = scmp.eq.s32.totalorder %s26, 0
      %s29 = sadd.s32 %s28, 1
      %s30 = scalar_select %p27, %s28, %s29
      %p33 = pneg %p27
      %p34 = scmp.eq.s32.totalorder %s18, 1
      %p35 = por %p33, %p34
      %p36 = scmp.ne.s32.totalorder %s28, %s31
      %p37 = scmp.eq.s32.totalorder %s18, 0
      %p38 = por %p36, %p37
      %p39 = scmp.ne.s32.totalorder %s28, %s31
      %p40 = scmp.eq.s32.totalorder %s23, 1
      %p41 = por %p39, %p40
      %p42 = scmp.ne.s32.totalorder %s31, %s32
      %p43 = scmp.eq.s32.totalorder %s23, 0
      %p44 = por %p42, %p43
      %p45 = scmp.ne.s32.totalorder %s31, %s32
      %p46 = scmp.eq.s32.totalorder %s24, 1
      %p47 = por %p45, %p46
      %p49 = scmp.ne.s32.totalorder %s32, %s48
      %p50 = scmp.eq.s32.totalorder %s24, 0
      %p51 = por %p49, %p50
      %s53 = sadd.s32 %s52, 1
      %p56 = scmp.eq.s32.totalorder %s18, 1
      %p57 = scmp.ne.s32.totalorder %s52, %s54
      %p58 = scmp.eq.s32.totalorder %s18, 0
      %p59 = por %p57, %p58
      %p60 = scmp.ne.s32.totalorder %s52, %s54
      %p61 = scmp.eq.s32.totalorder %s23, 1
      %p62 = por %p60, %p61
      %p63 = scmp.ne.s32.totalorder %s54, %s55
      %p64 = scmp.eq.s32.totalorder %s23, 0
      %p65 = por %p63, %p64
      %p66 = scmp.ne.s32.totalorder %s54, %s55
      %p67 = scmp.eq.s32.totalorder %s24, 1
      %p68 = por %p66, %p67
      %p70 = scmp.ne.s32.totalorder %s55, %s69
      %p71 = scmp.eq.s32.totalorder %s24, 0
      %p72 = por %p70, %p71
      %s74 = sadd.s32 %s73, 1
      %p77 = scmp.eq.s32.totalorder %s18, 1
      %p78 = scmp.ne.s32.totalorder %s73, %s75
      %p79 = scmp.eq.s32.totalorder %s18, 0
      %p80 = por %p78, %p79
      %p81 = scmp.ne.s32.totalorder %s73, %s75
      %p82 = scmp.eq.s32.totalorder %s23, 1
      %p83 = por %p81, %p82
      %p84 = scmp.ne.s32.totalorder %s75, %s76
      %p85 = scmp.eq.s32.totalorder %s23, 0
      %p86 = por %p84, %p85
      %p87 = scmp.ne.s32.totalorder %s75, %s76
      %p88 = scmp.eq.s32.totalorder %s24, 1
      %p89 = por %p87, %p88
      %p91 = scmp.ne.s32.totalorder %s76, %s90
      %p92 = scmp.eq.s32.totalorder %s24, 0
      %p93 = por %p91, %p92
      %s95 = sadd.s32 %s94, 1
      %p98 = scmp.eq.s32.totalorder %s18, 1
      %p99 = scmp.ne.s32.totalorder %s94, %s96
      %p100 = scmp.eq.s32.totalorder %s18, 0
      %p101 = por %p99, %p100
      %p102 = scmp.ne.s32.totalorder %s94, %s96
      %p103 = scmp.eq.s32.totalorder %s23, 1
      %p104 = por %p102, %p103
      %p105 = scmp.ne.s32.totalorder %s96, %s97
      %p106 = scmp.eq.s32.totalorder %s23, 0
      %p107 = por %p105, %p106
      %p108 = scmp.ne.s32.totalorder %s96, %s97
      %p109 = scmp.eq.s32.totalorder %s24, 1
      %p110 = por %p108, %p109
      %p112 = scmp.ne.s32.totalorder %s97, %s111
      %p113 = scmp.eq.s32.totalorder %s24, 0
      %p114 = por %p112, %p113
      %s116 = sadd.s32 %s115, 1
      %p119 = scmp.eq.s32.totalorder %s18, 1
      %p120 = scmp.ne.s32.totalorder %s115, %s117
      %p121 = scmp.eq.s32.totalorder %s18, 0
      %p122 = por %p120, %p121
      %p123 = scmp.ne.s32.totalorder %s115, %s117
      %p124 = scmp.eq.s32.totalorder %s23, 1
      %p125 = por %p123, %p124
      %p126 = scmp.ne.s32.totalorder %s117, %s118
      %p127 = scmp.eq.s32.totalorder %s23, 0
      %p128 = por %p126, %p127
      %p129 = scmp.ne.s32.totalorder %s117, %s118
      %p130 = scmp.eq.s32.totalorder %s24, 1
      %p131 = por %p129, %p130
      %p133 = scmp.ne.s32.totalorder %s118, %s132
      %p134 = scmp.eq.s32.totalorder %s24, 0
      %p135 = por %p133, %p134
      %s137 = sadd.s32 %s136, 1
      %p140 = scmp.eq.s32.totalorder %s18, 1
      %p141 = scmp.ne.s32.totalorder %s136, %s138
      %p142 = scmp.eq.s32.totalorder %s18, 0
      %p143 = por %p141, %p142
      %p144 = scmp.ne.s32.totalorder %s136, %s138
      %p145 = scmp.eq.s32.totalorder %s23, 1
      %p146 = por %p144, %p145
      %p147 = scmp.ne.s32.totalorder %s138, %s139
      %p148 = scmp.eq.s32.totalorder %s23, 0
      %p149 = por %p147, %p148
      %p150 = scmp.ne.s32.totalorder %s138, %s139
      %p151 = scmp.eq.s32.totalorder %s24, 1
      %p152 = por %p150, %p151
      %p154 = scmp.ne.s32.totalorder %s139, %s153
      %p155 = scmp.eq.s32.totalorder %s24, 0
      %p156 = por %p154, %p155
      %s158 = sadd.s32 %s157, 1
      %p161 = scmp.eq.s32.totalorder %s18, 1
      %p162 = scmp.ne.s32.totalorder %s157, %s159
      %p163 = scmp.eq.s32.totalorder %s18, 0
      %p164 = por %p162, %p163
      %p165 = scmp.ne.s32.totalorder %s157, %s159
      %p166 = scmp.eq.s32.totalorder %s23, 1
      %p167 = por %p165, %p166
      %p168 = scmp.ne.s32.totalorder %s159, %s160
      %p169 = scmp.eq.s32.totalorder %s23, 0
      %p170 = por %p168, %p169
      %p171 = scmp.ne.s32.totalorder %s159, %s160
      %p172 = scmp.eq.s32.totalorder %s24, 1
      %p173 = por %p171, %p172
      %p175 = scmp.ne.s32.totalorder %s160, %s174
      %p176 = scmp.eq.s32.totalorder %s24, 0
      %p177 = por %p175, %p176
      %s179 = sadd.s32 %s178, 1
      %p182 = scmp.eq.s32.totalorder %s18, 1
      %p183 = scmp.ne.s32.totalorder %s178, %s180
      %p184 = scmp.eq.s32.totalorder %s18, 0
      %p185 = por %p183, %p184
      %p186 = scmp.ne.s32.totalorder %s178, %s180
      %p187 = scmp.eq.s32.totalorder %s23, 1
      %p188 = por %p186, %p187
      %p189 = scmp.ne.s32.totalorder %s180, %s181
      %p190 = scmp.eq.s32.totalorder %s23, 0
      %p191 = por %p189, %p190
      %p192 = scmp.ne.s32.totalorder %s180, %s181
      %p193 = scmp.eq.s32.totalorder %s24, 1
      %p194 = por %p192, %p193
      %p196 = scmp.ne.s32.totalorder %s181, %s195
      %p197 = scmp.eq.s32.totalorder %s24, 0
      %p198 = por %p196, %p197
      %s200 = sadd.s32 %s199, 1
      %p203 = scmp.eq.s32.totalorder %s18, 1
      %p204 = scmp.ne.s32.totalorder %s199, %s201
      %p205 = scmp.eq.s32.totalorder %s18, 0
      %p206 = por %p204, %p205
      %p207 = scmp.ne.s32.totalorder %s199, %s201
      %p208 = scmp.eq.s32.totalorder %s23, 1
      %p209 = por %p207, %p208
      %p210 = scmp.ne.s32.totalorder %s201, %s202
      %p211 = scmp.eq.s32.totalorder %s23, 0
      %p212 = por %p210, %p211
      %p213 = scmp.ne.s32.totalorder %s201, %s202
      %p214 = scmp.eq.s32.totalorder %s24, 1
      %p215 = por %p213, %p214
      %p217 = scmp.ne.s32.totalorder %s202, %s216
      %p218 = scmp.eq.s32.totalorder %s24, 0
      %p219 = por %p217, %p218
      %s220 = ssub.s32 %s18, %s25
      %p221 = scmp.eq.s32.totalorder %s220, 0
      %s223 = sadd.s32 %s222, 1
      %s224 = scalar_select %p221, %s222, %s223
      %p227 = pneg %p221
      %p228 = scmp.eq.s32.totalorder %s18, 1
      %p229 = por %p227, %p228
      %p230 = scmp.ne.s32.totalorder %s222, %s225
      %p231 = scmp.eq.s32.totalorder %s18, 0
      %p232 = por %p230, %p231
      %p233 = scmp.ne.s32.totalorder %s222, %s225
      %p234 = scmp.eq.s32.totalorder %s23, 1
      %p235 = por %p233, %p234
      %p236 = scmp.ne.s32.totalorder %s225, %s226
      %p237 = scmp.eq.s32.totalorder %s23, 0
      %p238 = por %p236, %p237
      %p239 = scmp.ne.s32.totalorder %s225, %s226
      %p240 = scmp.eq.s32.totalorder %s24, 1
      %p241 = por %p239, %p240
      %p243 = scmp.ne.s32.totalorder %s226, %s242
      %p244 = scmp.eq.s32.totalorder %s24, 0
      %p245 = por %p243, %p244
      %p246 = scmp.le.s32.totalorder 1, %s18
      %p247 = scmp.lt.s32.totalorder %s18, 3
      %p248 = pnand %p246, %p247
      %p249 = pneg %p248
      // Predicated region
      $region9: #{tpu_custom_call.1} parent=5 // pred_check
        _
      $region10: #{tpu_custom_call.1} parent=5 // pred_check_branch
        %251 = sbr.rel (%p248) target = $region12
      $region11: #{tpu_custom_call.1} parent=5 // pred_region
        %s252 = ssub.s32 %s18, 1
        // Predicated region
        $region13: #{tpu_custom_call.1} parent=11 // pred_check
          %p253 = pneg %p65
        $region14: #{tpu_custom_call.1} parent=11 // pred_check_branch
          %255 = sbr.rel (%p253) target = $region16
        $region15: #{tpu_custom_call.1} parent=11 // pred_region
          _
        $region16: #{tpu_custom_call.1} parent=11 // pred_fallthru
          _
        // Predicated region
        $region17: #{tpu_custom_call.1} parent=11 // pred_check
          %p256 = pneg %p86
        $region18: #{tpu_custom_call.1} parent=11 // pred_check_branch
          %258 = sbr.rel (%p256) target = $region20
        $region19: #{tpu_custom_call.1} parent=11 // pred_region
          _
        $region20: #{tpu_custom_call.1} parent=11 // pred_fallthru
          _
        // Predicated region
        $region21: #{tpu_custom_call.1} parent=11 // pred_check
          %p259 = pneg %p107
        $region22: #{tpu_custom_call.1} parent=11 // pred_check_branch
          %261 = sbr.rel (%p259) target = $region24
        $region23: #{tpu_custom_call.1} parent=11 // pred_region
          _
        $region24: #{tpu_custom_call.1} parent=11 // pred_fallthru
          _
        // Predicated region
        $region25: #{tpu_custom_call.1} parent=11 // pred_check
          %p262 = pneg %p128
        $region26: #{tpu_custom_call.1} parent=11 // pred_check_branch
          %264 = sbr.rel (%p262) target = $region28
        $region27: #{tpu_custom_call.1} parent=11 // pred_region
          _
        $region28: #{tpu_custom_call.1} parent=11 // pred_fallthru
          _
        // Predicated region
        $region29: #{tpu_custom_call.1} parent=11 // pred_check
          %p265 = pneg %p149
        $region30: #{tpu_custom_call.1} parent=11 // pred_check_branch
          %267 = sbr.rel (%p265) target = $region32
        $region31: #{tpu_custom_call.1} parent=11 // pred_region
          _
        $region32: #{tpu_custom_call.1} parent=11 // pred_fallthru
          _
        // Predicated region
        $region33: #{tpu_custom_call.1} parent=11 // pred_check
          %p268 = pneg %p170
        $region34: #{tpu_custom_call.1} parent=11 // pred_check_branch
          %270 = sbr.rel (%p268) target = $region36
        $region35: #{tpu_custom_call.1} parent=11 // pred_region
          _
        $region36: #{tpu_custom_call.1} parent=11 // pred_fallthru
          _
        // Predicated region
        $region37: #{tpu_custom_call.1} parent=11 // pred_check
          %p271 = pneg %p191
        $region38: #{tpu_custom_call.1} parent=11 // pred_check_branch
          %273 = sbr.rel (%p271) target = $region40
        $region39: #{tpu_custom_call.1} parent=11 // pred_region
          _
        $region40: #{tpu_custom_call.1} parent=11 // pred_fallthru
          _
        // Predicated region
        $region41: #{tpu_custom_call.1} parent=11 // pred_check
          %p274 = pneg %p212
        $region42: #{tpu_custom_call.1} parent=11 // pred_check_branch
          %276 = sbr.rel (%p274) target = $region44
        $region43: #{tpu_custom_call.1} parent=11 // pred_region
          _
        $region44: #{tpu_custom_call.1} parent=11 // pred_fallthru
          _
      $region12: #{tpu_custom_call.1} parent=5 // pred_fallthru
        _
      %p277 = scmp.lt.s32.totalorder %s18, 2
      // Predicated region
      $region45: #{tpu_custom_call.1} parent=5 // pred_check
        %p278 = pneg %p277
      $region46: #{tpu_custom_call.1} parent=5 // pred_check_branch
        %280 = sbr.rel (%p278) target = $region48
      $region47: #{tpu_custom_call.1} parent=5 // pred_region
        // Predicated region
        $region49: #{tpu_custom_call.1} parent=47 // pred_check
          %p281 = pneg %p38
        $region50: #{tpu_custom_call.1} parent=47 // pred_check_branch
          %283 = sbr.rel (%p281) target = $region52
        $region51: #{tpu_custom_call.1} parent=47 // pred_region
          %p284 = scmp.lt.s32.totalorder %s18, 1
          %s285 = scalar_select %p284, %s18, 1
          %s286 = smul.addr %s285, 4
          %s287 = smul.addr %s286, 2
          %s288 = scalar_lea.vmem %s0, %s287
        $region52: #{tpu_custom_call.1} parent=47 // pred_fallthru
          _
      $region48: #{tpu_custom_call.1} parent=5 // pred_fallthru
        _
      %p289 = scmp.le.s32.totalorder 1, %s18
      %p290 = scmp.lt.s32.totalorder %s18, 3
      %p291 = pnand %p289, %p290
      %p292 = pneg %p291
      // Predicated region
      $region53: #{tpu_custom_call.1} parent=5 // pred_check
        _
      $region54: #{tpu_custom_call.1} parent=5 // pred_check_branch
        %294 = sbr.rel (%p291) target = $region56
      $region55: #{tpu_custom_call.1} parent=5 // pred_region
        %s295 = ssub.s32 %s18, 1
        %p296 = scmp.lt.s32.totalorder %s23, 1
        %s297 = scalar_select %p296, %s23, 1
        %s298 = smul.addr %s297, 4
        %s299 = smul.addr %s298, 2
        %s300 = scalar_lea.vmem %s0, %s299
        %p301 = pneg %p44
        %p302 = pneg %p41
        %p303 = pneg %p65
        %p304 = pneg %p62
        %p305 = pneg %p86
        %p306 = pneg %p83
        %p307 = pneg %p107
        %p308 = pneg %p104
        %p309 = pneg %p128
        %p310 = pneg %p125
        %p311 = pneg %p149
        %p312 = pneg %p146
        %p313 = pneg %p170
        %p314 = pneg %p167
        %p315 = pneg %p191
        %p316 = pneg %p188
        %p317 = pneg %p212
        %p318 = pneg %p209
        %p319 = pneg %p238
        %p320 = pneg %p235
        %s321 = sand.u32 %s225, 1
        %s322 = scalar_lea.sflag [#allocation4], %s321
        %s323 = sand.u32 %s225, 1
        %s324 = smul.addr %s323, 24
        %s325 = scalar_lea.vmem [#allocation3], %s324
        %p326 = scmp.lt.s32.totalorder %s23, 1
        %s327 = scalar_select %p326, %s23, 1
        %s328 = smul.addr %s327, 4
        %s329 = smul.addr %s328, 2
        %s330 = scalar_lea.vmem %s0, %s329
        %v332 = vld [vmem:[%s330] sm:$0xff]
        %v333 = vld [vmem:[%s2] sm:$0xf]
        %v334 = vld [vmem:[%s3] sm:$0xff]
        %336 = vset.pattern.permute.xlu0 0
        %337 = vperm.xlu0 %336, %v334
        %v338 = vpop.permute.xlu0 %337
        %v341 = vcombine.high %v332, %v332
        %v343 = vunpack.c.l.s4 1983009808
        %v344 = vunpack.c.0.s8 %v343
        %v345 = vlaneseq
        %v346 = vshrl.u32 %v345, 7
        %v347 = vsub.s32 %v344, %v346
        %v348 = vrot.slane %v332, %v347
        %v350 = vunpack.c.l.s4 1983009808
        %v351 = vunpack.c.0.s8 %v350
        %v352 = vlaneseq
        %v353 = vshrl.u32 %v352, 7
        %v354 = vsub.s32 %v351, %v353
        %v355 = vrot.slane %v341, %v354
        %v356 = vcombine.high %v348, %v348
        %v357 = vcombine.high %v355, %v355
        %358 = vrot.lane.b32.xlu0 %v348, 109
        %v359 = vpop.permute.xlu0 %358
        %360 = vrot.lane.b32.xlu0 %v356, 109
        %v361 = vpop.permute.xlu0 %360
        %362 = vrot.lane.b32.xlu0 %v355, 109
        %v363 = vpop.permute.xlu0 %362
        %364 = vrot.lane.b32.xlu0 %v357, 109
        %v365 = vpop.permute.xlu0 %364
        %vm366 = vcmask 891904
        %v367 = vsel %vm366, %v359, %v361
        %v368 = vsel %vm366, %v361, %v363
        %v369 = vsel %vm366, %v363, %v365
        %vm370 = vcmask 31744
        %v372 = vsel %vm370, %v333, 0
        %vm374 = vcmask 1041408
        %v376 = vsel %vm374, %v367, 0
        %v379 = vsel %vm374, %v368, 0
        %v382 = vsel %vm374, %v369, 0
        %384 = vmatprep.subr.bf16.mxu0 %v379
        %385 = vmatpush1.bf16.msra.mxu0 %v376
        %386 = vmatprep.subr.bf16.mxu0 0
        %387 = vmatpush1.bf16.msra.mxu0 0
        %388 = vmatprep.subr.bf16.mxu0 0
        %389 = vmatpush1.bf16.msra.mxu0 0
        %390 = vmatprep.subr.bf16.mxu0 0
        %391 = vmatpush1.bf16.msra.mxu0 0
        %392 = vmatprep.subr.bf16.mxu0 0
        %393 = vmatpush1.bf16.msra.mxu0 0
        %394 = vmatprep.subr.bf16.mxu0 0
        %395 = vmatpush1.bf16.msra.mxu0 0
        %396 = vmatprep.subr.bf16.mxu0 0
        %397 = vmatpush1.bf16.msra.mxu0 0
        %398 = vmatprep.subr.bf16.mxu0 0
        %399 = vmatpush1.bf16.msra.mxu0 0
        %400 = vmatprep.subr.bf16.mxu0 0
        %401 = vmatpush1.bf16.msra.mxu0 0
        %402 = vmatprep.subr.bf16.mxu0 0
        %403 = vmatpush1.bf16.msra.mxu0 0
        %404 = vmatprep.subr.bf16.mxu0 0
        %405 = vmatpush1.bf16.msra.mxu0 0
        %406 = vmatprep.subr.bf16.mxu0 0
        %407 = vmatpush1.bf16.msra.mxu0 0
        %408 = vmatprep.subr.bf16.mxu0 0
        %409 = vmatpush1.bf16.msra.mxu0 0
        %410 = vmatprep.subr.bf16.mxu0 0
        %411 = vmatpush1.bf16.msra.mxu0 0
        %412 = vmatprep.subr.bf16.mxu0 0
        %413 = vmatpush1.bf16.msra.mxu0 0
        %414 = vmatprep.subr.bf16.mxu0 0
        %415 = vmatpush1.bf16.msra.mxu0 0
        %416 = vmatprep.mubr.bf16.mxu0 0
        %417 = vmatmul.mubr.bf16.gmra.mrb[0].mxu0 %v372
        %v418 = vpop.f32.mrb[0].mxu0
        %v419 = vadd.f32 %v338, %v418
        %v420 = vpop.f32.mrb[0].mxu0
        %v421 = vadd.f32 %v338, %v420
        %v422 = vpop.f32.mrb[0].mxu0
        %v423 = vpop.f32.mrb[0].mxu0
        %424 = vdwg.mxu0
        %425 = vmatprep.subr.bf16.mxu0 0
        %426 = vmatpush1.bf16.msra.mxu0 %v382
        %427 = vmatprep.subr.bf16.mxu0 0
        %428 = vmatpush1.bf16.msra.mxu0 0
        %429 = vmatprep.subr.bf16.mxu0 0
        %430 = vmatpush1.bf16.msra.mxu0 0
        %431 = vmatprep.subr.bf16.mxu0 0
        %432 = vmatpush1.bf16.msra.mxu0 0
        %433 = vmatprep.subr.bf16.mxu0 0
        %434 = vmatpush1.bf16.msra.mxu0 0
        %435 = vmatprep.subr.bf16.mxu0 0
        %436 = vmatpush1.bf16.msra.mxu0 0
        %437 = vmatprep.subr.bf16.mxu0 0
        %438 = vmatpush1.bf16.msra.mxu0 0
        %439 = vmatprep.subr.bf16.mxu0 0
        %440 = vmatpush1.bf16.msra.mxu0 0
        %441 = vmatprep.subr.bf16.mxu0 0
        %442 = vmatpush1.bf16.msra.mxu0 0
        %443 = vmatprep.subr.bf16.mxu0 0
        %444 = vmatpush1.bf16.msra.mxu0 0
        %445 = vmatprep.subr.bf16.mxu0 0
        %446 = vmatpush1.bf16.msra.mxu0 0
        %447 = vmatprep.subr.bf16.mxu0 0
        %448 = vmatpush1.bf16.msra.mxu0 0
        %449 = vmatprep.subr.bf16.mxu0 0
        %450 = vmatpush1.bf16.msra.mxu0 0
        %451 = vmatprep.subr.bf16.mxu0 0
        %452 = vmatpush1.bf16.msra.mxu0 0
        %453 = vmatprep.subr.bf16.mxu0 0
        %454 = vmatpush1.bf16.msra.mxu0 0
        %455 = vmatprep.subr.bf16.mxu0 0
        %456 = vmatpush1.bf16.msra.mxu0 0
        %457 = vmatprep.mubr.bf16.mxu0 0
        %458 = vmatmul.mubr.bf16.gmra.mrb[0].mxu0 %v372
        %v459 = vpop.f32.mrb[0].mxu0
        %v460 = vadd.f32 %v338, %v459
        %v461 = vpop.f32.mrb[0].mxu0
        %v462 = vpop.f32.mrb[0].mxu0
        %v463 = vpop.f32.mrb[0].mxu0
        %464 = vdwg.mxu0
        %v465 = vmax.bf16 %v332, 0
        %v466 = vld [vmem:[%s4] sm:$0x1]
        %v467 = vld [vmem:[%s5] sm:$0x3]
        %469 = vset.pattern.permute.xlu0 0
        %470 = vperm.xlu0 %469, %v467
        %v471 = vpop.permute.xlu0 %470
        %v474 = vcombine.high %v465, %v465
        %v476 = vunpack.c.l.s4 1983009808
        %v477 = vunpack.c.0.s8 %v476
        %v478 = vlaneseq
        %v479 = vshrl.u32 %v478, 7
        %v480 = vsub.s32 %v477, %v479
        %v481 = vrot.slane %v465, %v480
        %v483 = vunpack.c.l.s4 1983009808
        %v484 = vunpack.c.0.s8 %v483
        %v485 = vlaneseq
        %v486 = vshrl.u32 %v485, 7
        %v487 = vsub.s32 %v484, %v486
        %v488 = vrot.slane %v474, %v487
        %v489 = vcombine.high %v481, %v481
        %v490 = vcombine.high %v488, %v488
        %v492 = vsel %vm370, %v466, 0
        %v495 = vsel %vm374, %v481, 0
        %v498 = vsel %vm374, %v489, 0
        %v501 = vsel %vm374, %v488, 0
        %v504 = vsel %vm374, %v490, 0
        %506 = vmatprep.subr.bf16.mxu0 %v498
        %507 = vmatpush1.bf16.msra.mxu0 %v495
        %508 = vmatprep.subr.bf16.mxu0 0
        %509 = vmatpush1.bf16.msra.mxu0 0
        %510 = vmatprep.subr.bf16.mxu0 0
        %511 = vmatpush1.bf16.msra.mxu0 0
        %512 = vmatprep.subr.bf16.mxu0 0
        %513 = vmatpush1.bf16.msra.mxu0 0
        %514 = vmatprep.subr.bf16.mxu0 0
        %515 = vmatpush1.bf16.msra.mxu0 0
        %516 = vmatprep.subr.bf16.mxu0 0
        %517 = vmatpush1.bf16.msra.mxu0 0
        %518 = vmatprep.subr.bf16.mxu0 0
        %519 = vmatpush1.bf16.msra.mxu0 0
        %520 = vmatprep.subr.bf16.mxu0 0
        %521 = vmatpush1.bf16.msra.mxu0 0
        %522 = vmatprep.subr.bf16.mxu0 0
        %523 = vmatpush1.bf16.msra.mxu0 0
        %524 = vmatprep.subr.bf16.mxu0 0
        %525 = vmatpush1.bf16.msra.mxu0 0
        %526 = vmatprep.subr.bf16.mxu0 0
        %527 = vmatpush1.bf16.msra.mxu0 0
        %528 = vmatprep.subr.bf16.mxu0 0
        %529 = vmatpush1.bf16.msra.mxu0 0
        %530 = vmatprep.subr.bf16.mxu0 0
        %531 = vmatpush1.bf16.msra.mxu0 0
        %532 = vmatprep.subr.bf16.mxu0 0
        %533 = vmatpush1.bf16.msra.mxu0 0
        %534 = vmatprep.subr.bf16.mxu0 0
        %535 = vmatpush1.bf16.msra.mxu0 0
        %536 = vmatprep.subr.bf16.mxu0 0
        %537 = vmatpush1.bf16.msra.mxu0 0
        %538 = vmatprep.mubr.bf16.mxu0 0
        %539 = vmatmul.mubr.bf16.gmra.mrb[0].mxu0 %v492
        %v540 = vpop.f32.mrb[0].mxu0
        %v541 = vadd.f32 %v471, %v540
        %v542 = vpop.f32.mrb[0].mxu0
        %v543 = vadd.f32 %v471, %v542
        %v544 = vpop.f32.mrb[0].mxu0
        %v545 = vpop.f32.mrb[0].mxu0
        %546 = vdwg.mxu0
        %547 = vmatprep.subr.bf16.mxu0 %v504
        %548 = vmatpush1.bf16.msra.mxu0 %v501
        %549 = vmatprep.subr.bf16.mxu0 0
        %550 = vmatpush1.bf16.msra.mxu0 0
        %551 = vmatprep.subr.bf16.mxu0 0
        %552 = vmatpush1.bf16.msra.mxu0 0
        %553 = vmatprep.subr.bf16.mxu0 0
        %554 = vmatpush1.bf16.msra.mxu0 0
        %555 = vmatprep.subr.bf16.mxu0 0
        %556 = vmatpush1.bf16.msra.mxu0 0
        %557 = vmatprep.subr.bf16.mxu0 0
        %558 = vmatpush1.bf16.msra.mxu0 0
        %559 = vmatprep.subr.bf16.mxu0 0
        %560 = vmatpush1.bf16.msra.mxu0 0
        %561 = vmatprep.subr.bf16.mxu0 0
        %562 = vmatpush1.bf16.msra.mxu0 0
        %563 = vmatprep.subr.bf16.mxu0 0
        %564 = vmatpush1.bf16.msra.mxu0 0
        %565 = vmatprep.subr.bf16.mxu0 0
        %566 = vmatpush1.bf16.msra.mxu0 0
        %567 = vmatprep.subr.bf16.mxu0 0
        %568 = vmatpush1.bf16.msra.mxu0 0
        %569 = vmatprep.subr.bf16.mxu0 0
        %570 = vmatpush1.bf16.msra.mxu0 0
        %571 = vmatprep.subr.bf16.mxu0 0
        %572 = vmatpush1.bf16.msra.mxu0 0
        %573 = vmatprep.subr.bf16.mxu0 0
        %574 = vmatpush1.bf16.msra.mxu0 0
        %575 = vmatprep.subr.bf16.mxu0 0
        %576 = vmatpush1.bf16.msra.mxu0 0
        %577 = vmatprep.subr.bf16.mxu0 0
        %578 = vmatpush1.bf16.msra.mxu0 0
        %579 = vmatprep.mubr.bf16.mxu0 0
        %580 = vmatmul.mubr.bf16.gmra.mrb[0].mxu0 %v492
        %v581 = vpop.f32.mrb[0].mxu0
        %v582 = vadd.f32 %v471, %v581
        %v583 = vpop.f32.mrb[0].mxu0
        %v584 = vadd.f32 %v471, %v583
        %v585 = vpop.f32.mrb[0].mxu0
        %v586 = vpop.f32.mrb[0].mxu0
        %587 = vdwg.mxu0
        %v588 = vmax.f32 %v541, 0.0
        %v589 = vmax.f32 %v543, 0.0
        %v590 = vmax.f32 %v582, 0.0
        %v591 = vmax.f32 %v584, 0.0
        %v592 = vld [vmem:[%s1] sm:$0xf]
        %v594 = vlaneseq
        %v595 = vshrl.u32 %v594, 7
        %v596 = vsub.s32 0, %v595
        %v597 = vrot.slane %v592, %v596
        %v598 = vlaneseq
        %v599 = vshrl.u32 %v598, 7
        %v600 = vsub.s32 1, %v599
        %v601 = vrot.slane %v592, %v600
        %v602 = vlaneseq
        %v603 = vshrl.u32 %v602, 7
        %v604 = vsub.s32 2, %v603
        %v605 = vrot.slane %v592, %v604
        %v606 = vlaneseq
        %v607 = vshrl.u32 %v606, 7
        %v608 = vsub.s32 3, %v607
        %v609 = vrot.slane %v592, %v608
        %v614 = vmul.f32 %v588, %v597
        %v615 = vmul.f32 %v589, %v601
        %v616 = vmul.f32 %v590, %v605
        %v617 = vmul.f32 %v591, %v609
        %v622 = vcombine.low %v614, %v615
        %v623 = vcombine.low %v616, %v617
        %v625 = vunpack.c.l.s4 1983009808
        %v626 = vunpack.c.0.s8 %v625
        %v627 = vlaneseq
        %v628 = vshrl.u32 %v627, 7
        %v629 = vsub.s32 %v626, %v628
        %v630 = vrot.slane %v622, %v629
        %v632 = vunpack.c.l.s4 1983009808
        %v633 = vunpack.c.0.s8 %v632
        %v634 = vlaneseq
        %v635 = vshrl.u32 %v634, 7
        %v636 = vsub.s32 %v633, %v635
        %v637 = vrot.slane %v623, %v636
        %v638 = vcombine.low %v630, %v637
        %640 = vst [vmem:[#allocation2] sm:$0xff] %v638
        %v641 = vld [vmem:[%s6] sm:$0x3]
        %v642 = vunpack.c.l.bf16 %v641
        %v643 = vld [vmem:[#allocation2] sm:$0x3f]
        %s644 = scalar_lea.vmem %s6, 2
        %v645 = vld [vmem:[%s644] sm:$0x3]
        %v646 = vunpack.c.l.bf16 %v645
        %v647 = vld [vmem:[#allocation2] sm:$0xff]
        %v649 = vcombine.high %v647, %v647
        %v651 = vunpack.c.l.s4 1983009808
        %v652 = vunpack.c.0.s8 %v651
        %v653 = vlaneseq
        %v654 = vshrl.u32 %v653, 7
        %v655 = vsub.s32 %v652, %v654
        %v656 = vrot.slane %v647, %v655
        %v658 = vunpack.c.l.s4 1983009808
        %v659 = vunpack.c.0.s8 %v658
        %v660 = vlaneseq
        %v661 = vshrl.u32 %v660, 7
        %v662 = vsub.s32 %v659, %v661
        %v663 = vrot.slane %v649, %v662
        %v664 = vcombine.high %v656, %v656
        %v665 = vcombine.high %v663, %v663
        %666 = vrot.lane.b32.xlu0 %v656, 127
        %v667 = vpop.permute.xlu0 %666
        %668 = vrot.lane.b32.xlu0 %v664, 127
        %v669 = vpop.permute.xlu0 %668
        %670 = vrot.lane.b32.xlu0 %v663, 127
        %v671 = vpop.permute.xlu0 %670
        %672 = vrot.lane.b32.xlu0 %v665, 127
        %v673 = vpop.permute.xlu0 %672
        %vm674 = vcmask 1039360
        %v675 = vsel %vm674, %v667, %v669
        %v676 = vsel %vm674, %v669, %v671
        %v677 = vsel %vm674, %v671, %v673
        %vm678 = vcmask 15360
        %v680 = vsel %vm678, %v646, 0
        %v682 = vsel %vm374, %v675, 0
        %v684 = vsel %vm374, %v676, 0
        %v686 = vsel %vm374, %v677, 0
        %688 = vmatprep.subr.mxu0 %v684
        %689 = vmatpush1.msra.mxu0 %v682
        %690 = vmatprep.subr.mxu0 0.0
        %691 = vmatpush1.msra.mxu0 0.0
        %692 = vmatprep.subr.mxu0 0.0
        %693 = vmatpush1.msra.mxu0 0.0
        %694 = vmatprep.subr.mxu0 0.0
        %695 = vmatpush1.msra.mxu0 0.0
        %696 = vmatprep.subr.mxu0 0.0
        %697 = vmatpush1.msra.mxu0 0.0
        %698 = vmatprep.subr.mxu0 0.0
        %699 = vmatpush1.msra.mxu0 0.0
        %700 = vmatprep.subr.mxu0 0.0
        %701 = vmatpush1.msra.mxu0 0.0
        %702 = vmatprep.subr.mxu0 0.0
        %703 = vmatpush1.msra.mxu0 0.0
        %704 = vmatprep.subr.mxu0 0.0
        %705 = vmatpush1.msra.mxu0 0.0
        %706 = vmatprep.subr.mxu0 0.0
        %707 = vmatpush1.msra.mxu0 0.0
        %708 = vmatprep.subr.mxu0 0.0
        %709 = vmatpush1.msra.mxu0 0.0
        %710 = vmatprep.subr.mxu0 0.0
        %711 = vmatpush1.msra.mxu0 0.0
        %712 = vmatprep.subr.mxu0 0.0
        %713 = vmatpush1.msra.mxu0 0.0
        %714 = vmatprep.subr.mxu0 0.0
        %715 = vmatpush1.msra.mxu0 0.0
        %716 = vmatprep.subr.mxu0 0.0
        %717 = vmatpush1.msra.mxu0 0.0
        %718 = vmatprep.subr.mxu0 0.0
        %719 = vmatpush1.msra.mxu0 0.0
        %720 = vmatprep.subr.mxu0 0.0
        %721 = vmatpush1.msra.mxu0 0.0
        %722 = vmatprep.subr.mxu0 0.0
        %723 = vmatpush1.msra.mxu0 0.0
        %724 = vmatprep.subr.mxu0 0.0
        %725 = vmatpush1.msra.mxu0 0.0
        %726 = vmatprep.subr.mxu0 0.0
        %727 = vmatpush1.msra.mxu0 0.0
        %728 = vmatprep.subr.mxu0 0.0
        %729 = vmatpush1.msra.mxu0 0.0
        %730 = vmatprep.subr.mxu0 0.0
        %731 = vmatpush1.msra.mxu0 0.0
        %732 = vmatprep.subr.mxu0 0.0
        %733 = vmatpush1.msra.mxu0 0.0
        %734 = vmatprep.subr.mxu0 0.0
        %735 = vmatpush1.msra.mxu0 0.0
        %736 = vmatprep.subr.mxu0 0.0
        %737 = vmatpush1.msra.mxu0 0.0
        %738 = vmatprep.subr.mxu0 0.0
        %739 = vmatpush1.msra.mxu0 0.0
        %740 = vmatprep.subr.mxu0 0.0
        %741 = vmatpush1.msra.mxu0 0.0
        %742 = vmatprep.subr.mxu0 0.0
        %743 = vmatpush1.msra.mxu0 0.0
        %744 = vmatprep.subr.mxu0 0.0
        %745 = vmatpush1.msra.mxu0 0.0
        %746 = vmatprep.subr.mxu0 0.0
        %747 = vmatpush1.msra.mxu0 0.0
        %748 = vmatprep.subr.mxu0 0.0
        %749 = vmatpush1.msra.mxu0 0.0
        %750 = vmatprep.subr.mxu0 0.0
        %751 = vmatpush1.msra.mxu0 0.0
        %752 = vmatprep.mubr.f32.mxu0 0.0
        %753 = vmatmul.mubr.f32.gmra.mrb[0].mxu0 %v680
        %v754 = vpop.f32.mrb[0].mxu0
        %v755 = vadd.f32 0.0, %v754
        %v756 = vpop.f32.mrb[0].mxu0
        %v757 = vadd.f32 0.0, %v756
        %758 = vdwg.mxu0
        %759 = vmatprep.subr.mxu0 0.0
        %760 = vmatpush1.msra.mxu0 %v686
        %761 = vmatprep.subr.mxu0 0.0
        %762 = vmatpush1.msra.mxu0 0.0
        %763 = vmatprep.subr.mxu0 0.0
        %764 = vmatpush1.msra.mxu0 0.0
        %765 = vmatprep.subr.mxu0 0.0
        %766 = vmatpush1.msra.mxu0 0.0
        %767 = vmatprep.subr.mxu0 0.0
        %768 = vmatpush1.msra.mxu0 0.0
        %769 = vmatprep.subr.mxu0 0.0
        %770 = vmatpush1.msra.mxu0 0.0
        %771 = vmatprep.subr.mxu0 0.0
        %772 = vmatpush1.msra.mxu0 0.0
        %773 = vmatprep.subr.mxu0 0.0
        %774 = vmatpush1.msra.mxu0 0.0
        %775 = vmatprep.subr.mxu0 0.0
        %776 = vmatpush1.msra.mxu0 0.0
        %777 = vmatprep.subr.mxu0 0.0
        %778 = vmatpush1.msra.mxu0 0.0
        %779 = vmatprep.subr.mxu0 0.0
        %780 = vmatpush1.msra.mxu0 0.0
        %781 = vmatprep.subr.mxu0 0.0
        %782 = vmatpush1.msra.mxu0 0.0
        %783 = vmatprep.subr.mxu0 0.0
        %784 = vmatpush1.msra.mxu0 0.0
        %785 = vmatprep.subr.mxu0 0.0
        %786 = vmatpush1.msra.mxu0 0.0
        %787 = vmatprep.subr.mxu0 0.0
        %788 = vmatpush1.msra.mxu0 0.0
        %789 = vmatprep.subr.mxu0 0.0
        %790 = vmatpush1.msra.mxu0 0.0
        %791 = vmatprep.subr.mxu0 0.0
        %792 = vmatpush1.msra.mxu0 0.0
        %793 = vmatprep.subr.mxu0 0.0
        %794 = vmatpush1.msra.mxu0 0.0
        %795 = vmatprep.subr.mxu0 0.0
        %796 = vmatpush1.msra.mxu0 0.0
        %797 = vmatprep.subr.mxu0 0.0
        %798 = vmatpush1.msra.mxu0 0.0
        %799 = vmatprep.subr.mxu0 0.0
        %800 = vmatpush1.msra.mxu0 0.0
        %801 = vmatprep.subr.mxu0 0.0
        %802 = vmatpush1.msra.mxu0 0.0
        %803 = vmatprep.subr.mxu0 0.0
        %804 = vmatpush1.msra.mxu0 0.0
        %805 = vmatprep.subr.mxu0 0.0
        %806 = vmatpush1.msra.mxu0 0.0
        %807 = vmatprep.subr.mxu0 0.0
        %808 = vmatpush1.msra.mxu0 0.0
        %809 = vmatprep.subr.mxu0 0.0
        %810 = vmatpush1.msra.mxu0 0.0
        %811 = vmatprep.subr.mxu0 0.0
        %812 = vmatpush1.msra.mxu0 0.0
        %813 = vmatprep.subr.mxu0 0.0
        %814 = vmatpush1.msra.mxu0 0.0
        %815 = vmatprep.subr.mxu0 0.0
        %816 = vmatpush1.msra.mxu0 0.0
        %817 = vmatprep.subr.mxu0 0.0
        %818 = vmatpush1.msra.mxu0 0.0
        %819 = vmatprep.subr.mxu0 0.0
        %820 = vmatpush1.msra.mxu0 0.0
        %821 = vmatprep.subr.mxu0 0.0
        %822 = vmatpush1.msra.mxu0 0.0
        %823 = vmatprep.mubr.f32.mxu0 0.0
        %824 = vmatmul.mubr.f32.gmra.mrb[0].mxu0 %v680
        %v825 = vpop.f32.mrb[0].mxu0
        %v826 = vadd.f32 0.0, %v825
        %v827 = vpop.f32.mrb[0].mxu0
        %828 = vdwg.mxu0
        %v830 = vcombine.high %v643, %v643
        %v832 = vunpack.c.l.s4 1983009808
        %v833 = vunpack.c.0.s8 %v832
        %v834 = vlaneseq
        %v835 = vshrl.u32 %v834, 7
        %v836 = vsub.s32 %v833, %v835
        %v837 = vrot.slane %v643, %v836
        %v839 = vunpack.c.l.s4 1983009808
        %v840 = vunpack.c.0.s8 %v839
        %v841 = vlaneseq
        %v842 = vshrl.u32 %v841, 7
        %v843 = vsub.s32 %v840, %v842
        %v844 = vrot.slane %v830, %v843
        %v845 = vcombine.high %v837, %v837
        %v847 = vsel %vm678, %v642, 0
        %v849 = vsel %vm374, %v837, 0
        %v851 = vsel %vm374, %v845, 0
        %v853 = vsel %vm374, %v844, 0
        %855 = vmatprep.subr.mxu0 %v851
        %856 = vmatpush1.msra.mxu0 %v849
        %857 = vmatprep.subr.mxu0 0.0
        %858 = vmatpush1.msra.mxu0 0.0
        %859 = vmatprep.subr.mxu0 0.0
        %860 = vmatpush1.msra.mxu0 0.0
        %861 = vmatprep.subr.mxu0 0.0
        %862 = vmatpush1.msra.mxu0 0.0
        %863 = vmatprep.subr.mxu0 0.0
        %864 = vmatpush1.msra.mxu0 0.0
        %865 = vmatprep.subr.mxu0 0.0
        %866 = vmatpush1.msra.mxu0 0.0
        %867 = vmatprep.subr.mxu0 0.0
        %868 = vmatpush1.msra.mxu0 0.0
        %869 = vmatprep.subr.mxu0 0.0
        %870 = vmatpush1.msra.mxu0 0.0
        %871 = vmatprep.subr.mxu0 0.0
        %872 = vmatpush1.msra.mxu0 0.0
        %873 = vmatprep.subr.mxu0 0.0
        %874 = vmatpush1.msra.mxu0 0.0
        %875 = vmatprep.subr.mxu0 0.0
        %876 = vmatpush1.msra.mxu0 0.0
        %877 = vmatprep.subr.mxu0 0.0
        %878 = vmatpush1.msra.mxu0 0.0
        %879 = vmatprep.subr.mxu0 0.0
        %880 = vmatpush1.msra.mxu0 0.0
        %881 = vmatprep.subr.mxu0 0.0
        %882 = vmatpush1.msra.mxu0 0.0
        %883 = vmatprep.subr.mxu0 0.0
        %884 = vmatpush1.msra.mxu0 0.0
        %885 = vmatprep.subr.mxu0 0.0
        %886 = vmatpush1.msra.mxu0 0.0
        %887 = vmatprep.subr.mxu0 0.0
        %888 = vmatpush1.msra.mxu0 0.0
        %889 = vmatprep.subr.mxu0 0.0
        %890 = vmatpush1.msra.mxu0 0.0
        %891 = vmatprep.subr.mxu0 0.0
        %892 = vmatpush1.msra.mxu0 0.0
        %893 = vmatprep.subr.mxu0 0.0
        %894 = vmatpush1.msra.mxu0 0.0
        %895 = vmatprep.subr.mxu0 0.0
        %896 = vmatpush1.msra.mxu0 0.0
        %897 = vmatprep.subr.mxu0 0.0
        %898 = vmatpush1.msra.mxu0 0.0
        %899 = vmatprep.subr.mxu0 0.0
        %900 = vmatpush1.msra.mxu0 0.0
        %901 = vmatprep.subr.mxu0 0.0
        %902 = vmatpush1.msra.mxu0 0.0
        %903 = vmatprep.subr.mxu0 0.0
        %904 = vmatpush1.msra.mxu0 0.0
        %905 = vmatprep.subr.mxu0 0.0
        %906 = vmatpush1.msra.mxu0 0.0
        %907 = vmatprep.subr.mxu0 0.0
        %908 = vmatpush1.msra.mxu0 0.0
        %909 = vmatprep.subr.mxu0 0.0
        %910 = vmatpush1.msra.mxu0 0.0
        %911 = vmatprep.subr.mxu0 0.0
        %912 = vmatpush1.msra.mxu0 0.0
        %913 = vmatprep.subr.mxu0 0.0
        %914 = vmatpush1.msra.mxu0 0.0
        %915 = vmatprep.subr.mxu0 0.0
        %916 = vmatpush1.msra.mxu0 0.0
        %917 = vmatprep.subr.mxu0 0.0
        %918 = vmatpush1.msra.mxu0 0.0
        %919 = vmatprep.mubr.f32.mxu0 0.0
        %920 = vmatmul.mubr.f32.gmra.mrb[0].mxu0 %v847
        %v921 = vpop.f32.mrb[0].mxu0
        %v922 = vadd.f32 %v755, %v921
        %v923 = vpop.f32.mrb[0].mxu0
        %v924 = vadd.f32 %v757, %v923
        %925 = vdwg.mxu0
        %926 = vmatprep.subr.mxu0 0.0
        %927 = vmatpush1.msra.mxu0 %v853
        %928 = vmatprep.subr.mxu0 0.0
        %929 = vmatpush1.msra.mxu0 0.0
        %930 = vmatprep.subr.mxu0 0.0
        %931 = vmatpush1.msra.mxu0 0.0
        %932 = vmatprep.subr.mxu0 0.0
        %933 = vmatpush1.msra.mxu0 0.0
        %934 = vmatprep.subr.mxu0 0.0
        %935 = vmatpush1.msra.mxu0 0.0
        %936 = vmatprep.subr.mxu0 0.0
        %937 = vmatpush1.msra.mxu0 0.0
        %938 = vmatprep.subr.mxu0 0.0
        %939 = vmatpush1.msra.mxu0 0.0
        %940 = vmatprep.subr.mxu0 0.0
        %941 = vmatpush1.msra.mxu0 0.0
        %942 = vmatprep.subr.mxu0 0.0
        %943 = vmatpush1.msra.mxu0 0.0
        %944 = vmatprep.subr.mxu0 0.0
        %945 = vmatpush1.msra.mxu0 0.0
        %946 = vmatprep.subr.mxu0 0.0
        %947 = vmatpush1.msra.mxu0 0.0
        %948 = vmatprep.subr.mxu0 0.0
        %949 = vmatpush1.msra.mxu0 0.0
        %950 = vmatprep.subr.mxu0 0.0
        %951 = vmatpush1.msra.mxu0 0.0
        %952 = vmatprep.subr.mxu0 0.0
        %953 = vmatpush1.msra.mxu0 0.0
        %954 = vmatprep.subr.mxu0 0.0
        %955 = vmatpush1.msra.mxu0 0.0
        %956 = vmatprep.subr.mxu0 0.0
        %957 = vmatpush1.msra.mxu0 0.0
        %958 = vmatprep.subr.mxu0 0.0
        %959 = vmatpush1.msra.mxu0 0.0
        %960 = vmatprep.subr.mxu0 0.0
        %961 = vmatpush1.msra.mxu0 0.0
        %962 = vmatprep.subr.mxu0 0.0
        %963 = vmatpush1.msra.mxu0 0.0
        %964 = vmatprep.subr.mxu0 0.0
        %965 = vmatpush1.msra.mxu0 0.0
        %966 = vmatprep.subr.mxu0 0.0
        %967 = vmatpush1.msra.mxu0 0.0
        %968 = vmatprep.subr.mxu0 0.0
        %969 = vmatpush1.msra.mxu0 0.0
        %970 = vmatprep.subr.mxu0 0.0
        %971 = vmatpush1.msra.mxu0 0.0
        %972 = vmatprep.subr.mxu0 0.0
        %973 = vmatpush1.msra.mxu0 0.0
        %974 = vmatprep.subr.mxu0 0.0
        %975 = vmatpush1.msra.mxu0 0.0
        %976 = vmatprep.subr.mxu0 0.0
        %977 = vmatpush1.msra.mxu0 0.0
        %978 = vmatprep.subr.mxu0 0.0
        %979 = vmatpush1.msra.mxu0 0.0
        %980 = vmatprep.subr.mxu0 0.0
        %981 = vmatpush1.msra.mxu0 0.0
        %982 = vmatprep.subr.mxu0 0.0
        %983 = vmatpush1.msra.mxu0 0.0
        %984 = vmatprep.subr.mxu0 0.0
        %985 = vmatpush1.msra.mxu0 0.0
        %986 = vmatprep.subr.mxu0 0.0
        %987 = vmatpush1.msra.mxu0 0.0
        %988 = vmatprep.subr.mxu0 0.0
        %989 = vmatpush1.msra.mxu0 0.0
        %990 = vmatprep.mubr.f32.mxu0 0.0
        %991 = vmatmul.mubr.f32.gmra.mrb[0].mxu0 %v847
        %v992 = vpop.f32.mrb[0].mxu0
        %v993 = vadd.f32 %v826, %v992
        %v994 = vpop.f32.mrb[0].mxu0
        %995 = vdwg.mxu0
        %s996 = scalar_lea.vmem %s6, 4
        %v997 = vld [vmem:[%s996] sm:$0x3]
        %v998 = vunpack.c.l.bf16 %v997
        %v999 = vld [vmem:[#allocation2] sm:$0xff]
        %v1001 = vcombine.high %v999, %v999
        %v1003 = vunpack.c.l.s4 1983009808
        %v1004 = vunpack.c.0.s8 %v1003
        %v1005 = vlaneseq
        %v1006 = vshrl.u32 %v1005, 7
        %v1007 = vsub.s32 %v1004, %v1006
        %v1008 = vrot.slane %v999, %v1007
        %v1010 = vunpack.c.l.s4 1983009808
        %v1011 = vunpack.c.0.s8 %v1010
        %v1012 = vlaneseq
        %v1013 = vshrl.u32 %v1012, 7
        %v1014 = vsub.s32 %v1011, %v1013
        %v1015 = vrot.slane %v1001, %v1014
        %v1016 = vcombine.high %v1008, %v1008
        %v1017 = vcombine.high %v1015, %v1015
        %1018 = vrot.lane.b32.xlu0 %v1008, 126
        %v1019 = vpop.permute.xlu0 %1018
        %1020 = vrot.lane.b32.xlu0 %v1016, 126
        %v1021 = vpop.permute.xlu0 %1020
        %1022 = vrot.lane.b32.xlu0 %v1015, 126
        %v1023 = vpop.permute.xlu0 %1022
        %1024 = vrot.lane.b32.xlu0 %v1017, 126
        %v1025 = vpop.permute.xlu0 %1024
        %vm1026 = vcmask 1031168
        %v1027 = vsel %vm1026, %v1019, %v1021
        %v1028 = vsel %vm1026, %v1021, %v1023
        %v1029 = vsel %vm1026, %v1023, %v1025
        %v1031 = vsel %vm678, %v998, 0
        %v1033 = vsel %vm374, %v1027, 0
        %v1035 = vsel %vm374, %v1028, 0
        %v1037 = vsel %vm374, %v1029, 0
        %1039 = vmatprep.subr.mxu0 %v1035
        %1040 = vmatpush1.msra.mxu0 %v1033
        %1041 = vmatprep.subr.mxu0 0.0
        %1042 = vmatpush1.msra.mxu0 0.0
        %1043 = vmatprep.subr.mxu0 0.0
        %1044 = vmatpush1.msra.mxu0 0.0
        %1045 = vmatprep.subr.mxu0 0.0
        %1046 = vmatpush1.msra.mxu0 0.0
        %1047 = vmatprep.subr.mxu0 0.0
        %1048 = vmatpush1.msra.mxu0 0.0
        %1049 = vmatprep.subr.mxu0 0.0
        %1050 = vmatpush1.msra.mxu0 0.0
        %1051 = vmatprep.subr.mxu0 0.0
        %1052 = vmatpush1.msra.mxu0 0.0
        %1053 = vmatprep.subr.mxu0 0.0
        %1054 = vmatpush1.msra.mxu0 0.0
        %1055 = vmatprep.subr.mxu0 0.0
        %1056 = vmatpush1.msra.mxu0 0.0
        %1057 = vmatprep.subr.mxu0 0.0
        %1058 = vmatpush1.msra.mxu0 0.0
        %1059 = vmatprep.subr.mxu0 0.0
        %1060 = vmatpush1.msra.mxu0 0.0
        %1061 = vmatprep.subr.mxu0 0.0
        %1062 = vmatpush1.msra.mxu0 0.0
        %1063 = vmatprep.subr.mxu0 0.0
        %1064 = vmatpush1.msra.mxu0 0.0
        %1065 = vmatprep.subr.mxu0 0.0
        %1066 = vmatpush1.msra.mxu0 0.0
        %1067 = vmatprep.subr.mxu0 0.0
        %1068 = vmatpush1.msra.mxu0 0.0
        %1069 = vmatprep.subr.mxu0 0.0
        %1070 = vmatpush1.msra.mxu0 0.0
        %1071 = vmatprep.subr.mxu0 0.0
        %1072 = vmatpush1.msra.mxu0 0.0
        %1073 = vmatprep.subr.mxu0 0.0
        %1074 = vmatpush1.msra.mxu0 0.0
        %1075 = vmatprep.subr.mxu0 0.0
        %1076 = vmatpush1.msra.mxu0 0.0
        %1077 = vmatprep.subr.mxu0 0.0
        %1078 = vmatpush1.msra.mxu0 0.0
        %1079 = vmatprep.subr.mxu0 0.0
        %1080 = vmatpush1.msra.mxu0 0.0
        %1081 = vmatprep.subr.mxu0 0.0
        %1082 = vmatpush1.msra.mxu0 0.0
        %1083 = vmatprep.subr.mxu0 0.0
        %1084 = vmatpush1.msra.mxu0 0.0
        %1085 = vmatprep.subr.mxu0 0.0
        %1086 = vmatpush1.msra.mxu0 0.0
        %1087 = vmatprep.subr.mxu0 0.0
        %1088 = vmatpush1.msra.mxu0 0.0
        %1089 = vmatprep.subr.mxu0 0.0
        %1090 = vmatpush1.msra.mxu0 0.0
        %1091 = vmatprep.subr.mxu0 0.0
        %1092 = vmatpush1.msra.mxu0 0.0
        %1093 = vmatprep.subr.mxu0 0.0
        %1094 = vmatpush1.msra.mxu0 0.0
        %1095 = vmatprep.subr.mxu0 0.0
        %1096 = vmatpush1.msra.mxu0 0.0
        %1097 = vmatprep.subr.mxu0 0.0
        %1098 = vmatpush1.msra.mxu0 0.0
        %1099 = vmatprep.subr.mxu0 0.0
        %1100 = vmatpush1.msra.mxu0 0.0
        %1101 = vmatprep.subr.mxu0 0.0
        %1102 = vmatpush1.msra.mxu0 0.0
        %1103 = vmatprep.mubr.f32.mxu0 0.0
        %1104 = vmatmul.mubr.f32.gmra.mrb[0].mxu0 %v1031
        %v1105 = vpop.f32.mrb[0].mxu0
        %v1106 = vadd.f32 0.0, %v1105
        %v1107 = vpop.f32.mrb[0].mxu0
        %v1108 = vadd.f32 0.0, %v1107
        %1109 = vdwg.mxu0
        %1110 = vmatprep.subr.mxu0 0.0
        %1111 = vmatpush1.msra.mxu0 %v1037
        %1112 = vmatprep.subr.mxu0 0.0
        %1113 = vmatpush1.msra.mxu0 0.0
        %1114 = vmatprep.subr.mxu0 0.0
        %1115 = vmatpush1.msra.mxu0 0.0
        %1116 = vmatprep.subr.mxu0 0.0
        %1117 = vmatpush1.msra.mxu0 0.0
        %1118 = vmatprep.subr.mxu0 0.0
        %1119 = vmatpush1.msra.mxu0 0.0
        %1120 = vmatprep.subr.mxu0 0.0
        %1121 = vmatpush1.msra.mxu0 0.0
        %1122 = vmatprep.subr.mxu0 0.0
        %1123 = vmatpush1.msra.mxu0 0.0
        %1124 = vmatprep.subr.mxu0 0.0
        %1125 = vmatpush1.msra.mxu0 0.0
        %1126 = vmatprep.subr.mxu0 0.0
        %1127 = vmatpush1.msra.mxu0 0.0
        %1128 = vmatprep.subr.mxu0 0.0
        %1129 = vmatpush1.msra.mxu0 0.0
        %1130 = vmatprep.subr.mxu0 0.0
        %1131 = vmatpush1.msra.mxu0 0.0
        %1132 = vmatprep.subr.mxu0 0.0
        %1133 = vmatpush1.msra.mxu0 0.0
        %1134 = vmatprep.subr.mxu0 0.0
        %1135 = vmatpush1.msra.mxu0 0.0
        %1136 = vmatprep.subr.mxu0 0.0
        %1137 = vmatpush1.msra.mxu0 0.0
        %1138 = vmatprep.subr.mxu0 0.0
        %1139 = vmatpush1.msra.mxu0 0.0
        %1140 = vmatprep.subr.mxu0 0.0
        %1141 = vmatpush1.msra.mxu0 0.0
        %1142 = vmatprep.subr.mxu0 0.0
        %1143 = vmatpush1.msra.mxu0 0.0
        %1144 = vmatprep.subr.mxu0 0.0
        %1145 = vmatpush1.msra.mxu0 0.0
        %1146 = vmatprep.subr.mxu0 0.0
        %1147 = vmatpush1.msra.mxu0 0.0
        %1148 = vmatprep.subr.mxu0 0.0
        %1149 = vmatpush1.msra.mxu0 0.0
        %1150 = vmatprep.subr.mxu0 0.0
        %1151 = vmatpush1.msra.mxu0 0.0
        %1152 = vmatprep.subr.mxu0 0.0
        %1153 = vmatpush1.msra.mxu0 0.0
        %1154 = vmatprep.subr.mxu0 0.0
        %1155 = vmatpush1.msra.mxu0 0.0
        %1156 = vmatprep.subr.mxu0 0.0
        %1157 = vmatpush1.msra.mxu0 0.0
        %1158 = vmatprep.subr.mxu0 0.0
        %1159 = vmatpush1.msra.mxu0 0.0
        %1160 = vmatprep.subr.mxu0 0.0
        %1161 = vmatpush1.msra.mxu0 0.0
        %1162 = vmatprep.subr.mxu0 0.0
        %1163 = vmatpush1.msra.mxu0 0.0
        %1164 = vmatprep.subr.mxu0 0.0
        %1165 = vmatpush1.msra.mxu0 0.0
        %1166 = vmatprep.subr.mxu0 0.0
        %1167 = vmatpush1.msra.mxu0 0.0
        %1168 = vmatprep.subr.mxu0 0.0
        %1169 = vmatpush1.msra.mxu0 0.0
        %1170 = vmatprep.subr.mxu0 0.0
        %1171 = vmatpush1.msra.mxu0 0.0
        %1172 = vmatprep.subr.mxu0 0.0
        %1173 = vmatpush1.msra.mxu0 0.0
        %1174 = vmatprep.mubr.f32.mxu0 0.0
        %1175 = vmatmul.mubr.f32.gmra.mrb[0].mxu0 %v1031
        %v1176 = vpop.f32.mrb[0].mxu0
        %v1177 = vadd.f32 0.0, %v1176
        %v1178 = vpop.f32.mrb[0].mxu0
        %1179 = vdwg.mxu0
        %v1180 = vadd.f32 %v922, %v1106
        %v1181 = vadd.f32 %v924, %v1108
        %v1182 = vadd.f32 %v993, %v1177
        %s1183 = scalar_lea.vmem %s6, 6
        %v1184 = vld [vmem:[%s1183] sm:$0x3]
        %v1185 = vunpack.c.l.bf16 %v1184
        %v1186 = vld [vmem:[#allocation2] sm:$0xff]
        %v1188 = vcombine.high %v1186, %v1186
        %v1190 = vunpack.c.l.s4 1983009808
        %v1191 = vunpack.c.0.s8 %v1190
        %v1192 = vlaneseq
        %v1193 = vshrl.u32 %v1192, 7
        %v1194 = vsub.s32 %v1191, %v1193
        %v1195 = vrot.slane %v1186, %v1194
        %v1197 = vunpack.c.l.s4 1983009808
        %v1198 = vunpack.c.0.s8 %v1197
        %v1199 = vlaneseq
        %v1200 = vshrl.u32 %v1199, 7
        %v1201 = vsub.s32 %v1198, %v1200
        %v1202 = vrot.slane %v1188, %v1201
        %v1203 = vcombine.high %v1195, %v1195
        %v1204 = vcombine.high %v1202, %v1202
        %1205 = vrot.lane.b32.xlu0 %v1195, 110
        %v1206 = vpop.permute.xlu0 %1205
        %1207 = vrot.lane.b32.xlu0 %v1203, 110
        %v1208 = vpop.permute.xlu0 %1207
        %1209 = vrot.lane.b32.xlu0 %v1202, 110
        %v1210 = vpop.permute.xlu0 %1209
        %1211 = vrot.lane.b32.xlu0 %v1204, 110
        %v1212 = vpop.permute.xlu0 %1211
        %vm1213 = vcmask 900096
        %v1214 = vsel %vm1213, %v1206, %v1208
        %v1215 = vsel %vm1213, %v1208, %v1210
        %v1216 = vsel %vm1213, %v1210, %v1212
        %v1218 = vsel %vm678, %v1185, 0
        %v1220 = vsel %vm374, %v1214, 0
        %v1222 = vsel %vm374, %v1215, 0
        %v1224 = vsel %vm374, %v1216, 0
        %1226 = vmatprep.subr.mxu0 %v1222
        %1227 = vmatpush1.msra.mxu0 %v1220
        %1228 = vmatprep.subr.mxu0 0.0
        %1229 = vmatpush1.msra.mxu0 0.0
        %1230 = vmatprep.subr.mxu0 0.0
        %1231 = vmatpush1.msra.mxu0 0.0
        %1232 = vmatprep.subr.mxu0 0.0
        %1233 = vmatpush1.msra.mxu0 0.0
        %1234 = vmatprep.subr.mxu0 0.0
        %1235 = vmatpush1.msra.mxu0 0.0
        %1236 = vmatprep.subr.mxu0 0.0
        %1237 = vmatpush1.msra.mxu0 0.0
        %1238 = vmatprep.subr.mxu0 0.0
        %1239 = vmatpush1.msra.mxu0 0.0
        %1240 = vmatprep.subr.mxu0 0.0
        %1241 = vmatpush1.msra.mxu0 0.0
        %1242 = vmatprep.subr.mxu0 0.0
        %1243 = vmatpush1.msra.mxu0 0.0
        %1244 = vmatprep.subr.mxu0 0.0
        %1245 = vmatpush1.msra.mxu0 0.0
        %1246 = vmatprep.subr.mxu0 0.0
        %1247 = vmatpush1.msra.mxu0 0.0
        %1248 = vmatprep.subr.mxu0 0.0
        %1249 = vmatpush1.msra.mxu0 0.0
        %1250 = vmatprep.subr.mxu0 0.0
        %1251 = vmatpush1.msra.mxu0 0.0
        %1252 = vmatprep.subr.mxu0 0.0
        %1253 = vmatpush1.msra.mxu0 0.0
        %1254 = vmatprep.subr.mxu0 0.0
        %1255 = vmatpush1.msra.mxu0 0.0
        %1256 = vmatprep.subr.mxu0 0.0
        %1257 = vmatpush1.msra.mxu0 0.0
        %1258 = vmatprep.subr.mxu0 0.0
        %1259 = vmatpush1.msra.mxu0 0.0
        %1260 = vmatprep.subr.mxu0 0.0
        %1261 = vmatpush1.msra.mxu0 0.0
        %1262 = vmatprep.subr.mxu0 0.0
        %1263 = vmatpush1.msra.mxu0 0.0
        %1264 = vmatprep.subr.mxu0 0.0
        %1265 = vmatpush1.msra.mxu0 0.0
        %1266 = vmatprep.subr.mxu0 0.0
        %1267 = vmatpush1.msra.mxu0 0.0
        %1268 = vmatprep.subr.mxu0 0.0
        %1269 = vmatpush1.msra.mxu0 0.0
        %1270 = vmatprep.subr.mxu0 0.0
        %1271 = vmatpush1.msra.mxu0 0.0
        %1272 = vmatprep.subr.mxu0 0.0
        %1273 = vmatpush1.msra.mxu0 0.0
        %1274 = vmatprep.subr.mxu0 0.0
        %1275 = vmatpush1.msra.mxu0 0.0
        %1276 = vmatprep.subr.mxu0 0.0
        %1277 = vmatpush1.msra.mxu0 0.0
        %1278 = vmatprep.subr.mxu0 0.0
        %1279 = vmatpush1.msra.mxu0 0.0
        %1280 = vmatprep.subr.mxu0 0.0
        %1281 = vmatpush1.msra.mxu0 0.0
        %1282 = vmatprep.subr.mxu0 0.0
        %1283 = vmatpush1.msra.mxu0 0.0
        %1284 = vmatprep.subr.mxu0 0.0
        %1285 = vmatpush1.msra.mxu0 0.0
        %1286 = vmatprep.subr.mxu0 0.0
        %1287 = vmatpush1.msra.mxu0 0.0
        %1288 = vmatprep.subr.mxu0 0.0
        %1289 = vmatpush1.msra.mxu0 0.0
        %1290 = vmatprep.mubr.f32.mxu0 0.0
        %1291 = vmatmul.mubr.f32.gmra.mrb[0].mxu0 %v1218
        %v1292 = vpop.f32.mrb[0].mxu0
        %v1293 = vadd.f32 0.0, %v1292
        %v1294 = vpop.f32.mrb[0].mxu0
        %v1295 = vadd.f32 0.0, %v1294
        %1296 = vdwg.mxu0
        %1297 = vmatprep.subr.mxu0 0.0
        %1298 = vmatpush1.msra.mxu0 %v1224
        %1299 = vmatprep.subr.mxu0 0.0
        %1300 = vmatpush1.msra.mxu0 0.0
        %1301 = vmatprep.subr.mxu0 0.0
        %1302 = vmatpush1.msra.mxu0 0.0
        %1303 = vmatprep.subr.mxu0 0.0
        %1304 = vmatpush1.msra.mxu0 0.0
        %1305 = vmatprep.subr.mxu0 0.0
        %1306 = vmatpush1.msra.mxu0 0.0
        %1307 = vmatprep.subr.mxu0 0.0
        %1308 = vmatpush1.msra.mxu0 0.0
        %1309 = vmatprep.subr.mxu0 0.0
        %1310 = vmatpush1.msra.mxu0 0.0
        %1311 = vmatprep.subr.mxu0 0.0
        %1312 = vmatpush1.msra.mxu0 0.0
        %1313 = vmatprep.subr.mxu0 0.0
        %1314 = vmatpush1.msra.mxu0 0.0
        %1315 = vmatprep.subr.mxu0 0.0
        %1316 = vmatpush1.msra.mxu0 0.0
        %1317 = vmatprep.subr.mxu0 0.0
        %1318 = vmatpush1.msra.mxu0 0.0
        %1319 = vmatprep.subr.mxu0 0.0
        %1320 = vmatpush1.msra.mxu0 0.0
        %1321 = vmatprep.subr.mxu0 0.0
        %1322 = vmatpush1.msra.mxu0 0.0
        %1323 = vmatprep.subr.mxu0 0.0
        %1324 = vmatpush1.msra.mxu0 0.0
        %1325 = vmatprep.subr.mxu0 0.0
        %1326 = vmatpush1.msra.mxu0 0.0
        %1327 = vmatprep.subr.mxu0 0.0
        %1328 = vmatpush1.msra.mxu0 0.0
        %1329 = vmatprep.subr.mxu0 0.0
        %1330 = vmatpush1.msra.mxu0 0.0
        %1331 = vmatprep.subr.mxu0 0.0
        %1332 = vmatpush1.msra.mxu0 0.0
        %1333 = vmatprep.subr.mxu0 0.0
        %1334 = vmatpush1.msra.mxu0 0.0
        %1335 = vmatprep.subr.mxu0 0.0
        %1336 = vmatpush1.msra.mxu0 0.0
        %1337 = vmatprep.subr.mxu0 0.0
        %1338 = vmatpush1.msra.mxu0 0.0
        %1339 = vmatprep.subr.mxu0 0.0
        %1340 = vmatpush1.msra.mxu0 0.0
        %1341 = vmatprep.subr.mxu0 0.0
        %1342 = vmatpush1.msra.mxu0 0.0
        %1343 = vmatprep.subr.mxu0 0.0
        %1344 = vmatpush1.msra.mxu0 0.0
        %1345 = vmatprep.subr.mxu0 0.0
        %1346 = vmatpush1.msra.mxu0 0.0
        %1347 = vmatprep.subr.mxu0 0.0
        %1348 = vmatpush1.msra.mxu0 0.0
        %1349 = vmatprep.subr.mxu0 0.0
        %1350 = vmatpush1.msra.mxu0 0.0
        %1351 = vmatprep.subr.mxu0 0.0
        %1352 = vmatpush1.msra.mxu0 0.0
        %1353 = vmatprep.subr.mxu0 0.0
        %1354 = vmatpush1.msra.mxu0 0.0
        %1355 = vmatprep.subr.mxu0 0.0
        %1356 = vmatpush1.msra.mxu0 0.0
        %1357 = vmatprep.subr.mxu0 0.0
        %1358 = vmatpush1.msra.mxu0 0.0
        %1359 = vmatprep.subr.mxu0 0.0
        %1360 = vmatpush1.msra.mxu0 0.0
        %1361 = vmatprep.mubr.f32.mxu0 0.0
        %1362 = vmatmul.mubr.f32.gmra.mrb[0].mxu0 %v1218
        %v1363 = vpop.f32.mrb[0].mxu0
        %v1364 = vadd.f32 0.0, %v1363
        %v1365 = vpop.f32.mrb[0].mxu0
        %1366 = vdwg.mxu0
        %v1367 = vadd.f32 %v1180, %v1293
        %v1368 = vadd.f32 %v1181, %v1295
        %v1369 = vadd.f32 %v1182, %v1364
        %s1370 = scalar_lea.vmem %s6, 8
        %v1371 = vld [vmem:[%s1370] sm:$0x3]
        %v1372 = vunpack.c.l.bf16 %v1371
        %v1373 = vld [vmem:[#allocation2] sm:$0xff]
        %v1375 = vcombine.high %v1373, %v1373
        %v1377 = vunpack.c.l.s4 1983009808
        %v1378 = vunpack.c.0.s8 %v1377
        %v1379 = vlaneseq
        %v1380 = vshrl.u32 %v1379, 7
        %v1381 = vsub.s32 %v1378, %v1380
        %v1382 = vrot.slane %v1373, %v1381
        %v1384 = vunpack.c.l.s4 1983009808
        %v1385 = vunpack.c.0.s8 %v1384
        %v1386 = vlaneseq
        %v1387 = vshrl.u32 %v1386, 7
        %v1388 = vsub.s32 %v1385, %v1387
        %v1389 = vrot.slane %v1375, %v1388
        %v1390 = vcombine.high %v1382, %v1382
        %v1391 = vcombine.high %v1389, %v1389
        %1392 = vrot.lane.b32.xlu0 %v1382, 109
        %v1393 = vpop.permute.xlu0 %1392
        %1394 = vrot.lane.b32.xlu0 %v1390, 109
        %v1395 = vpop.permute.xlu0 %1394
        %1396 = vrot.lane.b32.xlu0 %v1389, 109
        %v1397 = vpop.permute.xlu0 %1396
        %1398 = vrot.lane.b32.xlu0 %v1391, 109
        %v1399 = vpop.permute.xlu0 %1398
        %vm1400 = vcmask 891904
        %v1401 = vsel %vm1400, %v1393, %v1395
        %v1402 = vsel %vm1400, %v1395, %v1397
        %v1403 = vsel %vm1400, %v1397, %v1399
        %v1405 = vsel %vm678, %v1372, 0
        %v1407 = vsel %vm374, %v1401, 0
        %v1409 = vsel %vm374, %v1402, 0
        %v1411 = vsel %vm374, %v1403, 0
        %1413 = vmatprep.subr.mxu0 %v1409
        %1414 = vmatpush1.msra.mxu0 %v1407
        %1415 = vmatprep.subr.mxu0 0.0
        %1416 = vmatpush1.msra.mxu0 0.0
        %1417 = vmatprep.subr.mxu0 0.0
        %1418 = vmatpush1.msra.mxu0 0.0
        %1419 = vmatprep.subr.mxu0 0.0
        %1420 = vmatpush1.msra.mxu0 0.0
        %1421 = vmatprep.subr.mxu0 0.0
        %1422 = vmatpush1.msra.mxu0 0.0
        %1423 = vmatprep.subr.mxu0 0.0
        %1424 = vmatpush1.msra.mxu0 0.0
        %1425 = vmatprep.subr.mxu0 0.0
        %1426 = vmatpush1.msra.mxu0 0.0
        %1427 = vmatprep.subr.mxu0 0.0
        %1428 = vmatpush1.msra.mxu0 0.0
        %1429 = vmatprep.subr.mxu0 0.0
        %1430 = vmatpush1.msra.mxu0 0.0
        %1431 = vmatprep.subr.mxu0 0.0
        %1432 = vmatpush1.msra.mxu0 0.0
        %1433 = vmatprep.subr.mxu0 0.0
        %1434 = vmatpush1.msra.mxu0 0.0
        %1435 = vmatprep.subr.mxu0 0.0
        %1436 = vmatpush1.msra.mxu0 0.0
        %1437 = vmatprep.subr.mxu0 0.0
        %1438 = vmatpush1.msra.mxu0 0.0
        %1439 = vmatprep.subr.mxu0 0.0
        %1440 = vmatpush1.msra.mxu0 0.0
        %1441 = vmatprep.subr.mxu0 0.0
        %1442 = vmatpush1.msra.mxu0 0.0
        %1443 = vmatprep.subr.mxu0 0.0
        %1444 = vmatpush1.msra.mxu0 0.0
        %1445 = vmatprep.subr.mxu0 0.0
        %1446 = vmatpush1.msra.mxu0 0.0
        %1447 = vmatprep.subr.mxu0 0.0
        %1448 = vmatpush1.msra.mxu0 0.0
        %1449 = vmatprep.subr.mxu0 0.0
        %1450 = vmatpush1.msra.mxu0 0.0
        %1451 = vmatprep.subr.mxu0 0.0
        %1452 = vmatpush1.msra.mxu0 0.0
        %1453 = vmatprep.subr.mxu0 0.0
        %1454 = vmatpush1.msra.mxu0 0.0
        %1455 = vmatprep.subr.mxu0 0.0
        %1456 = vmatpush1.msra.mxu0 0.0
        %1457 = vmatprep.subr.mxu0 0.0
        %1458 = vmatpush1.msra.mxu0 0.0
        %1459 = vmatprep.subr.mxu0 0.0
        %1460 = vmatpush1.msra.mxu0 0.0
        %1461 = vmatprep.subr.mxu0 0.0
        %1462 = vmatpush1.msra.mxu0 0.0
        %1463 = vmatprep.subr.mxu0 0.0
        %1464 = vmatpush1.msra.mxu0 0.0
        %1465 = vmatprep.subr.mxu0 0.0
        %1466 = vmatpush1.msra.mxu0 0.0
        %1467 = vmatprep.subr.mxu0 0.0
        %1468 = vmatpush1.msra.mxu0 0.0
        %1469 = vmatprep.subr.mxu0 0.0
        %1470 = vmatpush1.msra.mxu0 0.0
        %1471 = vmatprep.subr.mxu0 0.0
        %1472 = vmatpush1.msra.mxu0 0.0
        %1473 = vmatprep.subr.mxu0 0.0
        %1474 = vmatpush1.msra.mxu0 0.0
        %1475 = vmatprep.subr.mxu0 0.0
        %1476 = vmatpush1.msra.mxu0 0.0
        %1477 = vmatprep.mubr.f32.mxu0 0.0
        %1478 = vmatmul.mubr.f32.gmra.mrb[0].mxu0 %v1405
        %v1479 = vpop.f32.mrb[0].mxu0
        %v1480 = vadd.f32 0.0, %v1479
        %v1481 = vpop.f32.mrb[0].mxu0
        %v1482 = vadd.f32 0.0, %v1481
        %1483 = vdwg.mxu0
        %1484 = vmatprep.subr.mxu0 0.0
        %1485 = vmatpush1.msra.mxu0 %v1411
        %1486 = vmatprep.subr.mxu0 0.0
        %1487 = vmatpush1.msra.mxu0 0.0
        %1488 = vmatprep.subr.mxu0 0.0
        %1489 = vmatpush1.msra.mxu0 0.0
        %1490 = vmatprep.subr.mxu0 0.0
        %1491 = vmatpush1.msra.mxu0 0.0
        %1492 = vmatprep.subr.mxu0 0.0
        %1493 = vmatpush1.msra.mxu0 0.0
        %1494 = vmatprep.subr.mxu0 0.0
        %1495 = vmatpush1.msra.mxu0 0.0
        %1496 = vmatprep.subr.mxu0 0.0
        %1497 = vmatpush1.msra.mxu0 0.0
        %1498 = vmatprep.subr.mxu0 0.0
        %1499 = vmatpush1.msra.mxu0 0.0
        %1500 = vmatprep.subr.mxu0 0.0
        %1501 = vmatpush1.msra.mxu0 0.0
        %1502 = vmatprep.subr.mxu0 0.0
        %1503 = vmatpush1.msra.mxu0 0.0
        %1504 = vmatprep.subr.mxu0 0.0
        %1505 = vmatpush1.msra.mxu0 0.0
        %1506 = vmatprep.subr.mxu0 0.0
        %1507 = vmatpush1.msra.mxu0 0.0
        %1508 = vmatprep.subr.mxu0 0.0
        %1509 = vmatpush1.msra.mxu0 0.0
        %1510 = vmatprep.subr.mxu0 0.0
        %1511 = vmatpush1.msra.mxu0 0.0
        %1512 = vmatprep.subr.mxu0 0.0
        %1513 = vmatpush1.msra.mxu0 0.0
        %1514 = vmatprep.subr.mxu0 0.0
        %1515 = vmatpush1.msra.mxu0 0.0
        %1516 = vmatprep.subr.mxu0 0.0
        %1517 = vmatpush1.msra.mxu0 0.0
        %1518 = vmatprep.subr.mxu0 0.0
        %1519 = vmatpush1.msra.mxu0 0.0
        %1520 = vmatprep.subr.mxu0 0.0
        %1521 = vmatpush1.msra.mxu0 0.0
        %1522 = vmatprep.subr.mxu0 0.0
        %1523 = vmatpush1.msra.mxu0 0.0
        %1524 = vmatprep.subr.mxu0 0.0
        %1525 = vmatpush1.msra.mxu0 0.0
        %1526 = vmatprep.subr.mxu0 0.0
        %1527 = vmatpush1.msra.mxu0 0.0
        %1528 = vmatprep.subr.mxu0 0.0
        %1529 = vmatpush1.msra.mxu0 0.0
        %1530 = vmatprep.subr.mxu0 0.0
        %1531 = vmatpush1.msra.mxu0 0.0
        %1532 = vmatprep.subr.mxu0 0.0
        %1533 = vmatpush1.msra.mxu0 0.0
        %1534 = vmatprep.subr.mxu0 0.0
        %1535 = vmatpush1.msra.mxu0 0.0
        %1536 = vmatprep.subr.mxu0 0.0
        %1537 = vmatpush1.msra.mxu0 0.0
        %1538 = vmatprep.subr.mxu0 0.0
        %1539 = vmatpush1.msra.mxu0 0.0
        %1540 = vmatprep.subr.mxu0 0.0
        %1541 = vmatpush1.msra.mxu0 0.0
        %1542 = vmatprep.subr.mxu0 0.0
        %1543 = vmatpush1.msra.mxu0 0.0
        %1544 = vmatprep.subr.mxu0 0.0
        %1545 = vmatpush1.msra.mxu0 0.0
        %1546 = vmatprep.subr.mxu0 0.0
        %1547 = vmatpush1.msra.mxu0 0.0
        %1548 = vmatprep.mubr.f32.mxu0 0.0
        %1549 = vmatmul.mubr.f32.gmra.mrb[0].mxu0 %v1405
        %v1550 = vpop.f32.mrb[0].mxu0
        %v1551 = vadd.f32 0.0, %v1550
        %v1552 = vpop.f32.mrb[0].mxu0
        %1553 = vdwg.mxu0
        %v1554 = vadd.f32 %v1367, %v1480
        %v1555 = vadd.f32 %v1368, %v1482
        %v1556 = vadd.f32 %v1369, %v1551
        %s1557 = scalar_lea.vmem %s6, 10
        %v1558 = vld [vmem:[%s1557] sm:$0x3]
        %v1559 = vunpack.c.l.bf16 %v1558
        %v1560 = vld [vmem:[#allocation2] sm:$0xff]
        %v1562 = vcombine.high %v1560, %v1560
        %v1564 = vunpack.c.l.s4 1983009808
        %v1565 = vunpack.c.0.s8 %v1564
        %v1566 = vlaneseq
        %v1567 = vshrl.u32 %v1566, 7
        %v1568 = vsub.s32 %v1565, %v1567
        %v1569 = vrot.slane %v1560, %v1568
        %v1571 = vunpack.c.l.s4 1983009808
        %v1572 = vunpack.c.0.s8 %v1571
        %v1573 = vlaneseq
        %v1574 = vshrl.u32 %v1573, 7
        %v1575 = vsub.s32 %v1572, %v1574
        %v1576 = vrot.slane %v1562, %v1575
        %v1577 = vcombine.high %v1569, %v1569
        %v1578 = vcombine.high %v1576, %v1576
        %1579 = vrot.lane.b32.xlu0 %v1569, 108
        %v1580 = vpop.permute.xlu0 %1579
        %1581 = vrot.lane.b32.xlu0 %v1577, 108
        %v1582 = vpop.permute.xlu0 %1581
        %1583 = vrot.lane.b32.xlu0 %v1576, 108
        %v1584 = vpop.permute.xlu0 %1583
        %1585 = vrot.lane.b32.xlu0 %v1578, 108
        %v1586 = vpop.permute.xlu0 %1585
        %vm1587 = vcmask 883712
        %v1588 = vsel %vm1587, %v1580, %v1582
        %v1589 = vsel %vm1587, %v1582, %v1584
        %v1590 = vsel %vm1587, %v1584, %v1586
        %v1592 = vsel %vm678, %v1559, 0
        %v1594 = vsel %vm374, %v1588, 0
        %v1596 = vsel %vm374, %v1589, 0
        %v1598 = vsel %vm374, %v1590, 0
        %1600 = vmatprep.subr.mxu0 %v1596
        %1601 = vmatpush1.msra.mxu0 %v1594
        %1602 = vmatprep.subr.mxu0 0.0
        %1603 = vmatpush1.msra.mxu0 0.0
        %1604 = vmatprep.subr.mxu0 0.0
        %1605 = vmatpush1.msra.mxu0 0.0
        %1606 = vmatprep.subr.mxu0 0.0
        %1607 = vmatpush1.msra.mxu0 0.0
        %1608 = vmatprep.subr.mxu0 0.0
        %1609 = vmatpush1.msra.mxu0 0.0
        %1610 = vmatprep.subr.mxu0 0.0
        %1611 = vmatpush1.msra.mxu0 0.0
        %1612 = vmatprep.subr.mxu0 0.0
        %1613 = vmatpush1.msra.mxu0 0.0
        %1614 = vmatprep.subr.mxu0 0.0
        %1615 = vmatpush1.msra.mxu0 0.0
        %1616 = vmatprep.subr.mxu0 0.0
        %1617 = vmatpush1.msra.mxu0 0.0
        %1618 = vmatprep.subr.mxu0 0.0
        %1619 = vmatpush1.msra.mxu0 0.0
        %1620 = vmatprep.subr.mxu0 0.0
        %1621 = vmatpush1.msra.mxu0 0.0
        %1622 = vmatprep.subr.mxu0 0.0
        %1623 = vmatpush1.msra.mxu0 0.0
        %1624 = vmatprep.subr.mxu0 0.0
        %1625 = vmatpush1.msra.mxu0 0.0
        %1626 = vmatprep.subr.mxu0 0.0
        %1627 = vmatpush1.msra.mxu0 0.0
        %1628 = vmatprep.subr.mxu0 0.0
        %1629 = vmatpush1.msra.mxu0 0.0
        %1630 = vmatprep.subr.mxu0 0.0
        %1631 = vmatpush1.msra.mxu0 0.0
        %1632 = vmatprep.subr.mxu0 0.0
        %1633 = vmatpush1.msra.mxu0 0.0
        %1634 = vmatprep.subr.mxu0 0.0
        %1635 = vmatpush1.msra.mxu0 0.0
        %1636 = vmatprep.subr.mxu0 0.0
        %1637 = vmatpush1.msra.mxu0 0.0
        %1638 = vmatprep.subr.mxu0 0.0
        %1639 = vmatpush1.msra.mxu0 0.0
        %1640 = vmatprep.subr.mxu0 0.0
        %1641 = vmatpush1.msra.mxu0 0.0
        %1642 = vmatprep.subr.mxu0 0.0
        %1643 = vmatpush1.msra.mxu0 0.0
        %1644 = vmatprep.subr.mxu0 0.0
        %1645 = vmatpush1.msra.mxu0 0.0
        %1646 = vmatprep.subr.mxu0 0.0
        %1647 = vmatpush1.msra.mxu0 0.0
        %1648 = vmatprep.subr.mxu0 0.0
        %1649 = vmatpush1.msra.mxu0 0.0
        %1650 = vmatprep.subr.mxu0 0.0
        %1651 = vmatpush1.msra.mxu0 0.0
        %1652 = vmatprep.subr.mxu0 0.0
        %1653 = vmatpush1.msra.mxu0 0.0
        %1654 = vmatprep.subr.mxu0 0.0
        %1655 = vmatpush1.msra.mxu0 0.0
        %1656 = vmatprep.subr.mxu0 0.0
        %1657 = vmatpush1.msra.mxu0 0.0
        %1658 = vmatprep.subr.mxu0 0.0
        %1659 = vmatpush1.msra.mxu0 0.0
        %1660 = vmatprep.subr.mxu0 0.0
        %1661 = vmatpush1.msra.mxu0 0.0
        %1662 = vmatprep.subr.mxu0 0.0
        %1663 = vmatpush1.msra.mxu0 0.0
        %1664 = vmatprep.mubr.f32.mxu0 0.0
        %1665 = vmatmul.mubr.f32.gmra.mrb[0].mxu0 %v1592
        %v1666 = vpop.f32.mrb[0].mxu0
        %v1667 = vadd.f32 0.0, %v1666
        %v1668 = vpop.f32.mrb[0].mxu0
        %v1669 = vadd.f32 0.0, %v1668
        %1670 = vdwg.mxu0
        %1671 = vmatprep.subr.mxu0 0.0
        %1672 = vmatpush1.msra.mxu0 %v1598
        %1673 = vmatprep.subr.mxu0 0.0
        %1674 = vmatpush1.msra.mxu0 0.0
        %1675 = vmatprep.subr.mxu0 0.0
        %1676 = vmatpush1.msra.mxu0 0.0
        %1677 = vmatprep.subr.mxu0 0.0
        %1678 = vmatpush1.msra.mxu0 0.0
        %1679 = vmatprep.subr.mxu0 0.0
        %1680 = vmatpush1.msra.mxu0 0.0
        %1681 = vmatprep.subr.mxu0 0.0
        %1682 = vmatpush1.msra.mxu0 0.0
        %1683 = vmatprep.subr.mxu0 0.0
        %1684 = vmatpush1.msra.mxu0 0.0
        %1685 = vmatprep.subr.mxu0 0.0
        %1686 = vmatpush1.msra.mxu0 0.0
        %1687 = vmatprep.subr.mxu0 0.0
        %1688 = vmatpush1.msra.mxu0 0.0
        %1689 = vmatprep.subr.mxu0 0.0
        %1690 = vmatpush1.msra.mxu0 0.0
        %1691 = vmatprep.subr.mxu0 0.0
        %1692 = vmatpush1.msra.mxu0 0.0
        %1693 = vmatprep.subr.mxu0 0.0
        %1694 = vmatpush1.msra.mxu0 0.0
        %1695 = vmatprep.subr.mxu0 0.0
        %1696 = vmatpush1.msra.mxu0 0.0
        %1697 = vmatprep.subr.mxu0 0.0
        %1698 = vmatpush1.msra.mxu0 0.0
        %1699 = vmatprep.subr.mxu0 0.0
        %1700 = vmatpush1.msra.mxu0 0.0
        %1701 = vmatprep.subr.mxu0 0.0
        %1702 = vmatpush1.msra.mxu0 0.0
        %1703 = vmatprep.subr.mxu0 0.0
        %1704 = vmatpush1.msra.mxu0 0.0
        %1705 = vmatprep.subr.mxu0 0.0
        %1706 = vmatpush1.msra.mxu0 0.0
        %1707 = vmatprep.subr.mxu0 0.0
        %1708 = vmatpush1.msra.mxu0 0.0
        %1709 = vmatprep.subr.mxu0 0.0
        %1710 = vmatpush1.msra.mxu0 0.0
        %1711 = vmatprep.subr.mxu0 0.0
        %1712 = vmatpush1.msra.mxu0 0.0
        %1713 = vmatprep.subr.mxu0 0.0
        %1714 = vmatpush1.msra.mxu0 0.0
        %1715 = vmatprep.subr.mxu0 0.0
        %1716 = vmatpush1.msra.mxu0 0.0
        %1717 = vmatprep.subr.mxu0 0.0
        %1718 = vmatpush1.msra.mxu0 0.0
        %1719 = vmatprep.subr.mxu0 0.0
        %1720 = vmatpush1.msra.mxu0 0.0
        %1721 = vmatprep.subr.mxu0 0.0
        %1722 = vmatpush1.msra.mxu0 0.0
        %1723 = vmatprep.subr.mxu0 0.0
        %1724 = vmatpush1.msra.mxu0 0.0
        %1725 = vmatprep.subr.mxu0 0.0
        %1726 = vmatpush1.msra.mxu0 0.0
        %1727 = vmatprep.subr.mxu0 0.0
        %1728 = vmatpush1.msra.mxu0 0.0
        %1729 = vmatprep.subr.mxu0 0.0
        %1730 = vmatpush1.msra.mxu0 0.0
        %1731 = vmatprep.subr.mxu0 0.0
        %1732 = vmatpush1.msra.mxu0 0.0
        %1733 = vmatprep.subr.mxu0 0.0
        %1734 = vmatpush1.msra.mxu0 0.0
        %1735 = vmatprep.mubr.f32.mxu0 0.0
        %1736 = vmatmul.mubr.f32.gmra.mrb[0].mxu0 %v1592
        %v1737 = vpop.f32.mrb[0].mxu0
        %v1738 = vadd.f32 0.0, %v1737
        %v1739 = vpop.f32.mrb[0].mxu0
        %1740 = vdwg.mxu0
        %v1741 = vadd.f32 %v1554, %v1667
        %v1742 = vadd.f32 %v1555, %v1669
        %v1743 = vadd.f32 %v1556, %v1738
        %s1744 = scalar_lea.vmem %s6, 12
        %v1745 = vld [vmem:[%s1744] sm:$0x3]
        %v1746 = vunpack.c.l.bf16 %v1745
        %v1747 = vld [vmem:[#allocation2] sm:$0xff]
        %v1749 = vcombine.high %v1747, %v1747
        %v1751 = vunpack.c.l.s4 1983009808
        %v1752 = vunpack.c.0.s8 %v1751
        %v1753 = vlaneseq
        %v1754 = vshrl.u32 %v1753, 7
        %v1755 = vsub.s32 %v1752, %v1754
        %v1756 = vrot.slane %v1747, %v1755
        %v1758 = vunpack.c.l.s4 1983009808
        %v1759 = vunpack.c.0.s8 %v1758
        %v1760 = vlaneseq
        %v1761 = vshrl.u32 %v1760, 7
        %v1762 = vsub.s32 %v1759, %v1761
        %v1763 = vrot.slane %v1749, %v1762
        %v1764 = vcombine.high %v1756, %v1756
        %v1765 = vcombine.high %v1763, %v1763
        %1766 = vrot.lane.b32.xlu0 %v1756, 92
        %v1767 = vpop.permute.xlu0 %1766
        %1768 = vrot.lane.b32.xlu0 %v1764, 92
        %v1769 = vpop.permute.xlu0 %1768
        %1770 = vrot.lane.b32.xlu0 %v1763, 92
        %v1771 = vpop.permute.xlu0 %1770
        %1772 = vrot.lane.b32.xlu0 %v1765, 92
        %v1773 = vpop.permute.xlu0 %1772
        %vm1774 = vcmask 752640
        %v1775 = vsel %vm1774, %v1767, %v1769
        %v1776 = vsel %vm1774, %v1769, %v1771
        %v1777 = vsel %vm1774, %v1771, %v1773
        %v1779 = vsel %vm678, %v1746, 0
        %v1781 = vsel %vm374, %v1775, 0
        %v1783 = vsel %vm374, %v1776, 0
        %v1785 = vsel %vm374, %v1777, 0
        %1787 = vmatprep.subr.mxu0 %v1783
        %1788 = vmatpush1.msra.mxu0 %v1781
        %1789 = vmatprep.subr.mxu0 0.0
        %1790 = vmatpush1.msra.mxu0 0.0
        %1791 = vmatprep.subr.mxu0 0.0
        %1792 = vmatpush1.msra.mxu0 0.0
        %1793 = vmatprep.subr.mxu0 0.0
        %1794 = vmatpush1.msra.mxu0 0.0
        %1795 = vmatprep.subr.mxu0 0.0
        %1796 = vmatpush1.msra.mxu0 0.0
        %1797 = vmatprep.subr.mxu0 0.0
        %1798 = vmatpush1.msra.mxu0 0.0
        %1799 = vmatprep.subr.mxu0 0.0
        %1800 = vmatpush1.msra.mxu0 0.0
        %1801 = vmatprep.subr.mxu0 0.0
        %1802 = vmatpush1.msra.mxu0 0.0
        %1803 = vmatprep.subr.mxu0 0.0
        %1804 = vmatpush1.msra.mxu0 0.0
        %1805 = vmatprep.subr.mxu0 0.0
        %1806 = vmatpush1.msra.mxu0 0.0
        %1807 = vmatprep.subr.mxu0 0.0
        %1808 = vmatpush1.msra.mxu0 0.0
        %1809 = vmatprep.subr.mxu0 0.0
        %1810 = vmatpush1.msra.mxu0 0.0
        %1811 = vmatprep.subr.mxu0 0.0
        %1812 = vmatpush1.msra.mxu0 0.0
        %1813 = vmatprep.subr.mxu0 0.0
        %1814 = vmatpush1.msra.mxu0 0.0
        %1815 = vmatprep.subr.mxu0 0.0
        %1816 = vmatpush1.msra.mxu0 0.0
        %1817 = vmatprep.subr.mxu0 0.0
        %1818 = vmatpush1.msra.mxu0 0.0
        %1819 = vmatprep.subr.mxu0 0.0
        %1820 = vmatpush1.msra.mxu0 0.0
        %1821 = vmatprep.subr.mxu0 0.0
        %1822 = vmatpush1.msra.mxu0 0.0
        %1823 = vmatprep.subr.mxu0 0.0
        %1824 = vmatpush1.msra.mxu0 0.0
        %1825 = vmatprep.subr.mxu0 0.0
        %1826 = vmatpush1.msra.mxu0 0.0
        %1827 = vmatprep.subr.mxu0 0.0
        %1828 = vmatpush1.msra.mxu0 0.0
        %1829 = vmatprep.subr.mxu0 0.0
        %1830 = vmatpush1.msra.mxu0 0.0
        %1831 = vmatprep.subr.mxu0 0.0
        %1832 = vmatpush1.msra.mxu0 0.0
        %1833 = vmatprep.subr.mxu0 0.0
        %1834 = vmatpush1.msra.mxu0 0.0
        %1835 = vmatprep.subr.mxu0 0.0
        %1836 = vmatpush1.msra.mxu0 0.0
        %1837 = vmatprep.subr.mxu0 0.0
        %1838 = vmatpush1.msra.mxu0 0.0
        %1839 = vmatprep.subr.mxu0 0.0
        %1840 = vmatpush1.msra.mxu0 0.0
        %1841 = vmatprep.subr.mxu0 0.0
        %1842 = vmatpush1.msra.mxu0 0.0
        %1843 = vmatprep.subr.mxu0 0.0
        %1844 = vmatpush1.msra.mxu0 0.0
        %1845 = vmatprep.subr.mxu0 0.0
        %1846 = vmatpush1.msra.mxu0 0.0
        %1847 = vmatprep.subr.mxu0 0.0
        %1848 = vmatpush1.msra.mxu0 0.0
        %1849 = vmatprep.subr.mxu0 0.0
        %1850 = vmatpush1.msra.mxu0 0.0
        %1851 = vmatprep.mubr.f32.mxu0 0.0
        %1852 = vmatmul.mubr.f32.gmra.mrb[0].mxu0 %v1779
        %v1853 = vpop.f32.mrb[0].mxu0
        %v1854 = vadd.f32 0.0, %v1853
        %v1855 = vpop.f32.mrb[0].mxu0
        %v1856 = vadd.f32 0.0, %v1855
        %1857 = vdwg.mxu0
        %1858 = vmatprep.subr.mxu0 0.0
        %1859 = vmatpush1.msra.mxu0 %v1785
        %1860 = vmatprep.subr.mxu0 0.0
        %1861 = vmatpush1.msra.mxu0 0.0
        %1862 = vmatprep.subr.mxu0 0.0
        %1863 = vmatpush1.msra.mxu0 0.0
        %1864 = vmatprep.subr.mxu0 0.0
        %1865 = vmatpush1.msra.mxu0 0.0
        %1866 = vmatprep.subr.mxu0 0.0
        %1867 = vmatpush1.msra.mxu0 0.0
        %1868 = vmatprep.subr.mxu0 0.0
        %1869 = vmatpush1.msra.mxu0 0.0
        %1870 = vmatprep.subr.mxu0 0.0
        %1871 = vmatpush1.msra.mxu0 0.0
        %1872 = vmatprep.subr.mxu0 0.0
        %1873 = vmatpush1.msra.mxu0 0.0
        %1874 = vmatprep.subr.mxu0 0.0
        %1875 = vmatpush1.msra.mxu0 0.0
        %1876 = vmatprep.subr.mxu0 0.0
        %1877 = vmatpush1.msra.mxu0 0.0
        %1878 = vmatprep.subr.mxu0 0.0
        %1879 = vmatpush1.msra.mxu0 0.0
        %1880 = vmatprep.subr.mxu0 0.0
        %1881 = vmatpush1.msra.mxu0 0.0
        %1882 = vmatprep.subr.mxu0 0.0
        %1883 = vmatpush1.msra.mxu0 0.0
        %1884 = vmatprep.subr.mxu0 0.0
        %1885 = vmatpush1.msra.mxu0 0.0
        %1886 = vmatprep.subr.mxu0 0.0
        %1887 = vmatpush1.msra.mxu0 0.0
        %1888 = vmatprep.subr.mxu0 0.0
        %1889 = vmatpush1.msra.mxu0 0.0
        %1890 = vmatprep.subr.mxu0 0.0
        %1891 = vmatpush1.msra.mxu0 0.0
        %1892 = vmatprep.subr.mxu0 0.0
        %1893 = vmatpush1.msra.mxu0 0.0
        %1894 = vmatprep.subr.mxu0 0.0
        %1895 = vmatpush1.msra.mxu0 0.0
        %1896 = vmatprep.subr.mxu0 0.0
        %1897 = vmatpush1.msra.mxu0 0.0
        %1898 = vmatprep.subr.mxu0 0.0
        %1899 = vmatpush1.msra.mxu0 0.0
        %1900 = vmatprep.subr.mxu0 0.0
        %1901 = vmatpush1.msra.mxu0 0.0
        %1902 = vmatprep.subr.mxu0 0.0
        %1903 = vmatpush1.msra.mxu0 0.0
        %1904 = vmatprep.subr.mxu0 0.0
        %1905 = vmatpush1.msra.mxu0 0.0
        %1906 = vmatprep.subr.mxu0 0.0
        %1907 = vmatpush1.msra.mxu0 0.0
        %1908 = vmatprep.subr.mxu0 0.0
        %1909 = vmatpush1.msra.mxu0 0.0
        %1910 = vmatprep.subr.mxu0 0.0
        %1911 = vmatpush1.msra.mxu0 0.0
        %1912 = vmatprep.subr.mxu0 0.0
        %1913 = vmatpush1.msra.mxu0 0.0
        %1914 = vmatprep.subr.mxu0 0.0
        %1915 = vmatpush1.msra.mxu0 0.0
        %1916 = vmatprep.subr.mxu0 0.0
        %1917 = vmatpush1.msra.mxu0 0.0
        %1918 = vmatprep.subr.mxu0 0.0
        %1919 = vmatpush1.msra.mxu0 0.0
        %1920 = vmatprep.subr.mxu0 0.0
        %1921 = vmatpush1.msra.mxu0 0.0
        %1922 = vmatprep.mubr.f32.mxu0 0.0
        %1923 = vmatmul.mubr.f32.gmra.mrb[0].mxu0 %v1779
        %v1924 = vpop.f32.mrb[0].mxu0
        %v1925 = vadd.f32 0.0, %v1924
        %v1926 = vpop.f32.mrb[0].mxu0
        %1927 = vdwg.mxu0
        %v1928 = vadd.f32 %v1741, %v1854
        %v1929 = vadd.f32 %v1742, %v1856
        %v1930 = vadd.f32 %v1743, %v1925
        %s1931 = scalar_lea.vmem %s6, 14
        %v1932 = vld [vmem:[%s1931] sm:$0x3]
        %v1933 = vunpack.c.l.bf16 %v1932
        %v1934 = vld [vmem:[#allocation2] sm:$0xff]
        %v1936 = vcombine.high %v1934, %v1934
        %v1938 = vunpack.c.l.s4 1983009808
        %v1939 = vunpack.c.0.s8 %v1938
        %v1940 = vlaneseq
        %v1941 = vshrl.u32 %v1940, 7
        %v1942 = vsub.s32 %v1939, %v1941
        %v1943 = vrot.slane %v1934, %v1942
        %v1945 = vunpack.c.l.s4 1983009808
        %v1946 = vunpack.c.0.s8 %v1945
        %v1947 = vlaneseq
        %v1948 = vshrl.u32 %v1947, 7
        %v1949 = vsub.s32 %v1946, %v1948
        %v1950 = vrot.slane %v1936, %v1949
        %v1951 = vcombine.high %v1943, %v1943
        %v1952 = vcombine.high %v1950, %v1950
        %1953 = vrot.lane.b32.xlu0 %v1943, 91
        %v1954 = vpop.permute.xlu0 %1953
        %1955 = vrot.lane.b32.xlu0 %v1951, 91
        %v1956 = vpop.permute.xlu0 %1955
        %1957 = vrot.lane.b32.xlu0 %v1950, 91
        %v1958 = vpop.permute.xlu0 %1957
        %1959 = vrot.lane.b32.xlu0 %v1952, 91
        %v1960 = vpop.permute.xlu0 %1959
        %vm1961 = vcmask 744448
        %v1962 = vsel %vm1961, %v1954, %v1956
        %v1963 = vsel %vm1961, %v1956, %v1958
        %v1964 = vsel %vm1961, %v1958, %v1960
        %v1966 = vsel %vm678, %v1933, 0
        %v1968 = vsel %vm374, %v1962, 0
        %v1970 = vsel %vm374, %v1963, 0
        %v1972 = vsel %vm374, %v1964, 0
        %1974 = vmatprep.subr.mxu0 %v1970
        %1975 = vmatpush1.msra.mxu0 %v1968
        %1976 = vmatprep.subr.mxu0 0.0
        %1977 = vmatpush1.msra.mxu0 0.0
        %1978 = vmatprep.subr.mxu0 0.0
        %1979 = vmatpush1.msra.mxu0 0.0
        %1980 = vmatprep.subr.mxu0 0.0
        %1981 = vmatpush1.msra.mxu0 0.0
        %1982 = vmatprep.subr.mxu0 0.0
        %1983 = vmatpush1.msra.mxu0 0.0
        %1984 = vmatprep.subr.mxu0 0.0
        %1985 = vmatpush1.msra.mxu0 0.0
        %1986 = vmatprep.subr.mxu0 0.0
        %1987 = vmatpush1.msra.mxu0 0.0
        %1988 = vmatprep.subr.mxu0 0.0
        %1989 = vmatpush1.msra.mxu0 0.0
        %1990 = vmatprep.subr.mxu0 0.0
        %1991 = vmatpush1.msra.mxu0 0.0
        %1992 = vmatprep.subr.mxu0 0.0
        %1993 = vmatpush1.msra.mxu0 0.0
        %1994 = vmatprep.subr.mxu0 0.0
        %1995 = vmatpush1.msra.mxu0 0.0
        %1996 = vmatprep.subr.mxu0 0.0
        %1997 = vmatpush1.msra.mxu0 0.0
        %1998 = vmatprep.subr.mxu0 0.0
        %1999 = vmatpush1.msra.mxu0 0.0
        %2000 = vmatprep.subr.mxu0 0.0
        %2001 = vmatpush1.msra.mxu0 0.0
        %2002 = vmatprep.subr.mxu0 0.0
        %2003 = vmatpush1.msra.mxu0 0.0
        %2004 = vmatprep.subr.mxu0 0.0
        %2005 = vmatpush1.msra.mxu0 0.0
        %2006 = vmatprep.subr.mxu0 0.0
        %2007 = vmatpush1.msra.mxu0 0.0
        %2008 = vmatprep.subr.mxu0 0.0
        %2009 = vmatpush1.msra.mxu0 0.0
        %2010 = vmatprep.subr.mxu0 0.0
        %2011 = vmatpush1.msra.mxu0 0.0
        %2012 = vmatprep.subr.mxu0 0.0
        %2013 = vmatpush1.msra.mxu0 0.0
        %2014 = vmatprep.subr.mxu0 0.0
        %2015 = vmatpush1.msra.mxu0 0.0
        %2016 = vmatprep.subr.mxu0 0.0
        %2017 = vmatpush1.msra.mxu0 0.0
        %2018 = vmatprep.subr.mxu0 0.0
        %2019 = vmatpush1.msra.mxu0 0.0
        %2020 = vmatprep.subr.mxu0 0.0
        %2021 = vmatpush1.msra.mxu0 0.0
        %2022 = vmatprep.subr.mxu0 0.0
        %2023 = vmatpush1.msra.mxu0 0.0
        %2024 = vmatprep.subr.mxu0 0.0
        %2025 = vmatpush1.msra.mxu0 0.0
        %2026 = vmatprep.subr.mxu0 0.0
        %2027 = vmatpush1.msra.mxu0 0.0
        %2028 = vmatprep.subr.mxu0 0.0
        %2029 = vmatpush1.msra.mxu0 0.0
        %2030 = vmatprep.subr.mxu0 0.0
        %2031 = vmatpush1.msra.mxu0 0.0
        %2032 = vmatprep.subr.mxu0 0.0
        %2033 = vmatpush1.msra.mxu0 0.0
        %2034 = vmatprep.subr.mxu0 0.0
        %2035 = vmatpush1.msra.mxu0 0.0
        %2036 = vmatprep.subr.mxu0 0.0
        %2037 = vmatpush1.msra.mxu0 0.0
        %2038 = vmatprep.mubr.f32.mxu0 0.0
        %2039 = vmatmul.mubr.f32.gmra.mrb[0].mxu0 %v1966
        %v2040 = vpop.f32.mrb[0].mxu0
        %v2041 = vadd.f32 0.0, %v2040
        %v2042 = vpop.f32.mrb[0].mxu0
        %v2043 = vadd.f32 0.0, %v2042
        %2044 = vdwg.mxu0
        %2045 = vmatprep.subr.mxu0 0.0
        %2046 = vmatpush1.msra.mxu0 %v1972
        %2047 = vmatprep.subr.mxu0 0.0
        %2048 = vmatpush1.msra.mxu0 0.0
        %2049 = vmatprep.subr.mxu0 0.0
        %2050 = vmatpush1.msra.mxu0 0.0
        %2051 = vmatprep.subr.mxu0 0.0
        %2052 = vmatpush1.msra.mxu0 0.0
        %2053 = vmatprep.subr.mxu0 0.0
        %2054 = vmatpush1.msra.mxu0 0.0
        %2055 = vmatprep.subr.mxu0 0.0
        %2056 = vmatpush1.msra.mxu0 0.0
        %2057 = vmatprep.subr.mxu0 0.0
        %2058 = vmatpush1.msra.mxu0 0.0
        %2059 = vmatprep.subr.mxu0 0.0
        %2060 = vmatpush1.msra.mxu0 0.0
        %2061 = vmatprep.subr.mxu0 0.0
        %2062 = vmatpush1.msra.mxu0 0.0
        %2063 = vmatprep.subr.mxu0 0.0
        %2064 = vmatpush1.msra.mxu0 0.0
        %2065 = vmatprep.subr.mxu0 0.0
        %2066 = vmatpush1.msra.mxu0 0.0
        %2067 = vmatprep.subr.mxu0 0.0
        %2068 = vmatpush1.msra.mxu0 0.0
        %2069 = vmatprep.subr.mxu0 0.0
        %2070 = vmatpush1.msra.mxu0 0.0
        %2071 = vmatprep.subr.mxu0 0.0
        %2072 = vmatpush1.msra.mxu0 0.0
        %2073 = vmatprep.subr.mxu0 0.0
        %2074 = vmatpush1.msra.mxu0 0.0
        %2075 = vmatprep.subr.mxu0 0.0
        %2076 = vmatpush1.msra.mxu0 0.0
        %2077 = vmatprep.subr.mxu0 0.0
        %2078 = vmatpush1.msra.mxu0 0.0
        %2079 = vmatprep.subr.mxu0 0.0
        %2080 = vmatpush1.msra.mxu0 0.0
        %2081 = vmatprep.subr.mxu0 0.0
        %2082 = vmatpush1.msra.mxu0 0.0
        %2083 = vmatprep.subr.mxu0 0.0
        %2084 = vmatpush1.msra.mxu0 0.0
        %2085 = vmatprep.subr.mxu0 0.0
        %2086 = vmatpush1.msra.mxu0 0.0
        %2087 = vmatprep.subr.mxu0 0.0
        %2088 = vmatpush1.msra.mxu0 0.0
        %2089 = vmatprep.subr.mxu0 0.0
        %2090 = vmatpush1.msra.mxu0 0.0
        %2091 = vmatprep.subr.mxu0 0.0
        %2092 = vmatpush1.msra.mxu0 0.0
        %2093 = vmatprep.subr.mxu0 0.0
        %2094 = vmatpush1.msra.mxu0 0.0
        %2095 = vmatprep.subr.mxu0 0.0
        %2096 = vmatpush1.msra.mxu0 0.0
        %2097 = vmatprep.subr.mxu0 0.0
        %2098 = vmatpush1.msra.mxu0 0.0
        %2099 = vmatprep.subr.mxu0 0.0
        %2100 = vmatpush1.msra.mxu0 0.0
        %2101 = vmatprep.subr.mxu0 0.0
        %2102 = vmatpush1.msra.mxu0 0.0
        %2103 = vmatprep.subr.mxu0 0.0
        %2104 = vmatpush1.msra.mxu0 0.0
        %2105 = vmatprep.subr.mxu0 0.0
        %2106 = vmatpush1.msra.mxu0 0.0
        %2107 = vmatprep.subr.mxu0 0.0
        %2108 = vmatpush1.msra.mxu0 0.0
        %2109 = vmatprep.mubr.f32.mxu0 0.0
        %2110 = vmatmul.mubr.f32.gmra.mrb[0].mxu0 %v1966
        %v2111 = vpop.f32.mrb[0].mxu0
        %v2112 = vadd.f32 0.0, %v2111
        %v2113 = vpop.f32.mrb[0].mxu0
        %2114 = vdwg.mxu0
        %v2115 = vadd.f32 %v1928, %v2041
        %v2116 = vadd.f32 %v1929, %v2043
        %v2117 = vadd.f32 %v1930, %v2112
        %s2118 = scalar_lea.vmem %s6, 16
        %v2119 = vld [vmem:[%s2118] sm:$0x3]
        %v2120 = vunpack.c.l.bf16 %v2119
        %v2121 = vld [vmem:[#allocation2] sm:$0xff]
        %v2123 = vcombine.high %v2121, %v2121
        %v2125 = vunpack.c.l.s4 1983009808
        %v2126 = vunpack.c.0.s8 %v2125
        %v2127 = vlaneseq
        %v2128 = vshrl.u32 %v2127, 7
        %v2129 = vsub.s32 %v2126, %v2128
        %v2130 = vrot.slane %v2121, %v2129
        %v2132 = vunpack.c.l.s4 1983009808
        %v2133 = vunpack.c.0.s8 %v2132
        %v2134 = vlaneseq
        %v2135 = vshrl.u32 %v2134, 7
        %v2136 = vsub.s32 %v2133, %v2135
        %v2137 = vrot.slane %v2123, %v2136
        %v2138 = vcombine.high %v2130, %v2130
        %v2139 = vcombine.high %v2137, %v2137
        %2140 = vrot.lane.b32.xlu0 %v2130, 90
        %v2141 = vpop.permute.xlu0 %2140
        %2142 = vrot.lane.b32.xlu0 %v2138, 90
        %v2143 = vpop.permute.xlu0 %2142
        %2144 = vrot.lane.b32.xlu0 %v2137, 90
        %v2145 = vpop.permute.xlu0 %2144
        %2146 = vrot.lane.b32.xlu0 %v2139, 90
        %v2147 = vpop.permute.xlu0 %2146
        %vm2148 = vcmask 736256
        %v2149 = vsel %vm2148, %v2141, %v2143
        %v2150 = vsel %vm2148, %v2143, %v2145
        %v2151 = vsel %vm2148, %v2145, %v2147
        %v2153 = vsel %vm678, %v2120, 0
        %v2155 = vsel %vm374, %v2149, 0
        %v2157 = vsel %vm374, %v2150, 0
        %v2159 = vsel %vm374, %v2151, 0
        %2161 = vmatprep.subr.mxu0 %v2157
        %2162 = vmatpush1.msra.mxu0 %v2155
        %2163 = vmatprep.subr.mxu0 0.0
        %2164 = vmatpush1.msra.mxu0 0.0
        %2165 = vmatprep.subr.mxu0 0.0
        %2166 = vmatpush1.msra.mxu0 0.0
        %2167 = vmatprep.subr.mxu0 0.0
        %2168 = vmatpush1.msra.mxu0 0.0
        %2169 = vmatprep.subr.mxu0 0.0
        %2170 = vmatpush1.msra.mxu0 0.0
        %2171 = vmatprep.subr.mxu0 0.0
        %2172 = vmatpush1.msra.mxu0 0.0
        %2173 = vmatprep.subr.mxu0 0.0
        %2174 = vmatpush1.msra.mxu0 0.0
        %2175 = vmatprep.subr.mxu0 0.0
        %2176 = vmatpush1.msra.mxu0 0.0
        %2177 = vmatprep.subr.mxu0 0.0
        %2178 = vmatpush1.msra.mxu0 0.0
        %2179 = vmatprep.subr.mxu0 0.0
        %2180 = vmatpush1.msra.mxu0 0.0
        %2181 = vmatprep.subr.mxu0 0.0
        %2182 = vmatpush1.msra.mxu0 0.0
        %2183 = vmatprep.subr.mxu0 0.0
        %2184 = vmatpush1.msra.mxu0 0.0
        %2185 = vmatprep.subr.mxu0 0.0
        %2186 = vmatpush1.msra.mxu0 0.0
        %2187 = vmatprep.subr.mxu0 0.0
        %2188 = vmatpush1.msra.mxu0 0.0
        %2189 = vmatprep.subr.mxu0 0.0
        %2190 = vmatpush1.msra.mxu0 0.0
        %2191 = vmatprep.subr.mxu0 0.0
        %2192 = vmatpush1.msra.mxu0 0.0
        %2193 = vmatprep.subr.mxu0 0.0
        %2194 = vmatpush1.msra.mxu0 0.0
        %2195 = vmatprep.subr.mxu0 0.0
        %2196 = vmatpush1.msra.mxu0 0.0
        %2197 = vmatprep.subr.mxu0 0.0
        %2198 = vmatpush1.msra.mxu0 0.0
        %2199 = vmatprep.subr.mxu0 0.0
        %2200 = vmatpush1.msra.mxu0 0.0
        %2201 = vmatprep.subr.mxu0 0.0
        %2202 = vmatpush1.msra.mxu0 0.0
        %2203 = vmatprep.subr.mxu0 0.0
        %2204 = vmatpush1.msra.mxu0 0.0
        %2205 = vmatprep.subr.mxu0 0.0
        %2206 = vmatpush1.msra.mxu0 0.0
        %2207 = vmatprep.subr.mxu0 0.0
        %2208 = vmatpush1.msra.mxu0 0.0
        %2209 = vmatprep.subr.mxu0 0.0
        %2210 = vmatpush1.msra.mxu0 0.0
        %2211 = vmatprep.subr.mxu0 0.0
        %2212 = vmatpush1.msra.mxu0 0.0
        %2213 = vmatprep.subr.mxu0 0.0
        %2214 = vmatpush1.msra.mxu0 0.0
        %2215 = vmatprep.subr.mxu0 0.0
        %2216 = vmatpush1.msra.mxu0 0.0
        %2217 = vmatprep.subr.mxu0 0.0
        %2218 = vmatpush1.msra.mxu0 0.0
        %2219 = vmatprep.subr.mxu0 0.0
        %2220 = vmatpush1.msra.mxu0 0.0
        %2221 = vmatprep.subr.mxu0 0.0
        %2222 = vmatpush1.msra.mxu0 0.0
        %2223 = vmatprep.subr.mxu0 0.0
        %2224 = vmatpush1.msra.mxu0 0.0
        %2225 = vmatprep.mubr.f32.mxu0 0.0
        %2226 = vmatmul.mubr.f32.gmra.mrb[0].mxu0 %v2153
        %v2227 = vpop.f32.mrb[0].mxu0
        %v2228 = vadd.f32 0.0, %v2227
        %v2229 = vpop.f32.mrb[0].mxu0
        %v2230 = vadd.f32 0.0, %v2229
        %2231 = vdwg.mxu0
        %2232 = vmatprep.subr.mxu0 0.0
        %2233 = vmatpush1.msra.mxu0 %v2159
        %2234 = vmatprep.subr.mxu0 0.0
        %2235 = vmatpush1.msra.mxu0 0.0
        %2236 = vmatprep.subr.mxu0 0.0
        %2237 = vmatpush1.msra.mxu0 0.0
        %2238 = vmatprep.subr.mxu0 0.0
        %2239 = vmatpush1.msra.mxu0 0.0
        %2240 = vmatprep.subr.mxu0 0.0
        %2241 = vmatpush1.msra.mxu0 0.0
        %2242 = vmatprep.subr.mxu0 0.0
        %2243 = vmatpush1.msra.mxu0 0.0
        %2244 = vmatprep.subr.mxu0 0.0
        %2245 = vmatpush1.msra.mxu0 0.0
        %2246 = vmatprep.subr.mxu0 0.0
        %2247 = vmatpush1.msra.mxu0 0.0
        %2248 = vmatprep.subr.mxu0 0.0
        %2249 = vmatpush1.msra.mxu0 0.0
        %2250 = vmatprep.subr.mxu0 0.0
        %2251 = vmatpush1.msra.mxu0 0.0
        %2252 = vmatprep.subr.mxu0 0.0
        %2253 = vmatpush1.msra.mxu0 0.0
        %2254 = vmatprep.subr.mxu0 0.0
        %2255 = vmatpush1.msra.mxu0 0.0
        %2256 = vmatprep.subr.mxu0 0.0
        %2257 = vmatpush1.msra.mxu0 0.0
        %2258 = vmatprep.subr.mxu0 0.0
        %2259 = vmatpush1.msra.mxu0 0.0
        %2260 = vmatprep.subr.mxu0 0.0
        %2261 = vmatpush1.msra.mxu0 0.0
        %2262 = vmatprep.subr.mxu0 0.0
        %2263 = vmatpush1.msra.mxu0 0.0
        %2264 = vmatprep.subr.mxu0 0.0
        %2265 = vmatpush1.msra.mxu0 0.0
        %2266 = vmatprep.subr.mxu0 0.0
        %2267 = vmatpush1.msra.mxu0 0.0
        %2268 = vmatprep.subr.mxu0 0.0
        %2269 = vmatpush1.msra.mxu0 0.0
        %2270 = vmatprep.subr.mxu0 0.0
        %2271 = vmatpush1.msra.mxu0 0.0
        %2272 = vmatprep.subr.mxu0 0.0
        %2273 = vmatpush1.msra.mxu0 0.0
        %2274 = vmatprep.subr.mxu0 0.0
        %2275 = vmatpush1.msra.mxu0 0.0
        %2276 = vmatprep.subr.mxu0 0.0
        %2277 = vmatpush1.msra.mxu0 0.0
        %2278 = vmatprep.subr.mxu0 0.0
        %2279 = vmatpush1.msra.mxu0 0.0
        %2280 = vmatprep.subr.mxu0 0.0
        %2281 = vmatpush1.msra.mxu0 0.0
        %2282 = vmatprep.subr.mxu0 0.0
        %2283 = vmatpush1.msra.mxu0 0.0
        %2284 = vmatprep.subr.mxu0 0.0
        %2285 = vmatpush1.msra.mxu0 0.0
        %2286 = vmatprep.subr.mxu0 0.0
        %2287 = vmatpush1.msra.mxu0 0.0
        %2288 = vmatprep.subr.mxu0 0.0
        %2289 = vmatpush1.msra.mxu0 0.0
        %2290 = vmatprep.subr.mxu0 0.0
        %2291 = vmatpush1.msra.mxu0 0.0
        %2292 = vmatprep.subr.mxu0 0.0
        %2293 = vmatpush1.msra.mxu0 0.0
        %2294 = vmatprep.subr.mxu0 0.0
        %2295 = vmatpush1.msra.mxu0 0.0
        %2296 = vmatprep.mubr.f32.mxu0 0.0
        %2297 = vmatmul.mubr.f32.gmra.mrb[0].mxu0 %v2153
        %v2298 = vpop.f32.mrb[0].mxu0
        %v2299 = vadd.f32 0.0, %v2298
        %v2300 = vpop.f32.mrb[0].mxu0
        %2301 = vdwg.mxu0
        %v2302 = vadd.f32 %v2115, %v2228
        %v2303 = vadd.f32 %v2116, %v2230
        %v2304 = vadd.f32 %v2117, %v2299
        %v2305 = vld [vmem:[%s7] sm:$0xf]
        %2307 = vset.pattern.permute.xlu0 0
        %2308 = vperm.xlu0 %2307, %v2305
        %v2309 = vpop.permute.xlu0 %2308
        %v2311 = vadd.f32 %v2302, %v2309
        %v2312 = vadd.f32 %v2303, %v2309
        %v2313 = vadd.f32 %v2304, %v2309
        %v2314 = vmax.f32 %v2311, 0.0
        %v2315 = vmax.f32 %v2312, 0.0
        %v2316 = vmax.f32 %v2313, 0.0
        %v2317 = vld [vmem:[%s8] sm:$0xf]
        %v2318 = vunpack.c.l.bf16 %v2317
        %v2320 = vsel %vm370, %v2318, 0
        %vm2322 = vcmask 1043456
        %v2324 = vsel %vm2322, %v2314, 0
        %v2327 = vsel %vm2322, %v2315, 0
        %v2330 = vsel %vm2322, %v2316, 0
        %2332 = vmatprep.subr.mxu0 %v2327
        %2333 = vmatpush1.msra.mxu0 %v2324
        %2334 = vmatprep.subr.mxu0 0.0
        %2335 = vmatpush1.msra.mxu0 0.0
        %2336 = vmatprep.subr.mxu0 0.0
        %2337 = vmatpush1.msra.mxu0 0.0
        %2338 = vmatprep.subr.mxu0 0.0
        %2339 = vmatpush1.msra.mxu0 0.0
        %2340 = vmatprep.subr.mxu0 0.0
        %2341 = vmatpush1.msra.mxu0 0.0
        %2342 = vmatprep.subr.mxu0 0.0
        %2343 = vmatpush1.msra.mxu0 0.0
        %2344 = vmatprep.subr.mxu0 0.0
        %2345 = vmatpush1.msra.mxu0 0.0
        %2346 = vmatprep.subr.mxu0 0.0
        %2347 = vmatpush1.msra.mxu0 0.0
        %2348 = vmatprep.subr.mxu0 0.0
        %2349 = vmatpush1.msra.mxu0 0.0
        %2350 = vmatprep.subr.mxu0 0.0
        %2351 = vmatpush1.msra.mxu0 0.0
        %2352 = vmatprep.subr.mxu0 0.0
        %2353 = vmatpush1.msra.mxu0 0.0
        %2354 = vmatprep.subr.mxu0 0.0
        %2355 = vmatpush1.msra.mxu0 0.0
        %2356 = vmatprep.subr.mxu0 0.0
        %2357 = vmatpush1.msra.mxu0 0.0
        %2358 = vmatprep.subr.mxu0 0.0
        %2359 = vmatpush1.msra.mxu0 0.0
        %2360 = vmatprep.subr.mxu0 0.0
        %2361 = vmatpush1.msra.mxu0 0.0
        %2362 = vmatprep.subr.mxu0 0.0
        %2363 = vmatpush1.msra.mxu0 0.0
        %2364 = vmatprep.subr.mxu0 0.0
        %2365 = vmatpush1.msra.mxu0 0.0
        %2366 = vmatprep.subr.mxu0 0.0
        %2367 = vmatpush1.msra.mxu0 0.0
        %2368 = vmatprep.subr.mxu0 0.0
        %2369 = vmatpush1.msra.mxu0 0.0
        %2370 = vmatprep.subr.mxu0 0.0
        %2371 = vmatpush1.msra.mxu0 0.0
        %2372 = vmatprep.subr.mxu0 0.0
        %2373 = vmatpush1.msra.mxu0 0.0
        %2374 = vmatprep.subr.mxu0 0.0
        %2375 = vmatpush1.msra.mxu0 0.0
        %2376 = vmatprep.subr.mxu0 0.0
        %2377 = vmatpush1.msra.mxu0 0.0
        %2378 = vmatprep.subr.mxu0 0.0
        %2379 = vmatpush1.msra.mxu0 0.0
        %2380 = vmatprep.subr.mxu0 0.0
        %2381 = vmatpush1.msra.mxu0 0.0
        %2382 = vmatprep.subr.mxu0 0.0
        %2383 = vmatpush1.msra.mxu0 0.0
        %2384 = vmatprep.subr.mxu0 0.0
        %2385 = vmatpush1.msra.mxu0 0.0
        %2386 = vmatprep.subr.mxu0 0.0
        %2387 = vmatpush1.msra.mxu0 0.0
        %2388 = vmatprep.subr.mxu0 0.0
        %2389 = vmatpush1.msra.mxu0 0.0
        %2390 = vmatprep.subr.mxu0 0.0
        %2391 = vmatpush1.msra.mxu0 0.0
        %2392 = vmatprep.subr.mxu0 0.0
        %2393 = vmatpush1.msra.mxu0 0.0
        %2394 = vmatprep.subr.mxu0 0.0
        %2395 = vmatpush1.msra.mxu0 0.0
        %2396 = vmatprep.mubr.f32.mxu0 0.0
        %2397 = vmatmul.mubr.f32.gmra.mrb[0].mxu0 %v2320
        %v2398 = vpop.f32.mrb[0].mxu0
        %v2399 = vadd.f32 0.0, %v2398
        %v2400 = vpop.f32.mrb[0].mxu0
        %v2401 = vadd.f32 0.0, %v2400
        %2402 = vdwg.mxu0
        %2403 = vmatprep.subr.mxu0 0.0
        %2404 = vmatpush1.msra.mxu0 %v2330
        %2405 = vmatprep.subr.mxu0 0.0
        %2406 = vmatpush1.msra.mxu0 0.0
        %2407 = vmatprep.subr.mxu0 0.0
        %2408 = vmatpush1.msra.mxu0 0.0
        %2409 = vmatprep.subr.mxu0 0.0
        %2410 = vmatpush1.msra.mxu0 0.0
        %2411 = vmatprep.subr.mxu0 0.0
        %2412 = vmatpush1.msra.mxu0 0.0
        %2413 = vmatprep.subr.mxu0 0.0
        %2414 = vmatpush1.msra.mxu0 0.0
        %2415 = vmatprep.subr.mxu0 0.0
        %2416 = vmatpush1.msra.mxu0 0.0
        %2417 = vmatprep.subr.mxu0 0.0
        %2418 = vmatpush1.msra.mxu0 0.0
        %2419 = vmatprep.subr.mxu0 0.0
        %2420 = vmatpush1.msra.mxu0 0.0
        %2421 = vmatprep.subr.mxu0 0.0
        %2422 = vmatpush1.msra.mxu0 0.0
        %2423 = vmatprep.subr.mxu0 0.0
        %2424 = vmatpush1.msra.mxu0 0.0
        %2425 = vmatprep.subr.mxu0 0.0
        %2426 = vmatpush1.msra.mxu0 0.0
        %2427 = vmatprep.subr.mxu0 0.0
        %2428 = vmatpush1.msra.mxu0 0.0
        %2429 = vmatprep.subr.mxu0 0.0
        %2430 = vmatpush1.msra.mxu0 0.0
        %2431 = vmatprep.subr.mxu0 0.0
        %2432 = vmatpush1.msra.mxu0 0.0
        %2433 = vmatprep.subr.mxu0 0.0
        %2434 = vmatpush1.msra.mxu0 0.0
        %2435 = vmatprep.subr.mxu0 0.0
        %2436 = vmatpush1.msra.mxu0 0.0
        %2437 = vmatprep.subr.mxu0 0.0
        %2438 = vmatpush1.msra.mxu0 0.0
        %2439 = vmatprep.subr.mxu0 0.0
        %2440 = vmatpush1.msra.mxu0 0.0
        %2441 = vmatprep.subr.mxu0 0.0
        %2442 = vmatpush1.msra.mxu0 0.0
        %2443 = vmatprep.subr.mxu0 0.0
        %2444 = vmatpush1.msra.mxu0 0.0
        %2445 = vmatprep.subr.mxu0 0.0
        %2446 = vmatpush1.msra.mxu0 0.0
        %2447 = vmatprep.subr.mxu0 0.0
        %2448 = vmatpush1.msra.mxu0 0.0
        %2449 = vmatprep.subr.mxu0 0.0
        %2450 = vmatpush1.msra.mxu0 0.0
        %2451 = vmatprep.subr.mxu0 0.0
        %2452 = vmatpush1.msra.mxu0 0.0
        %2453 = vmatprep.subr.mxu0 0.0
        %2454 = vmatpush1.msra.mxu0 0.0
        %2455 = vmatprep.subr.mxu0 0.0
        %2456 = vmatpush1.msra.mxu0 0.0
        %2457 = vmatprep.subr.mxu0 0.0
        %2458 = vmatpush1.msra.mxu0 0.0
        %2459 = vmatprep.subr.mxu0 0.0
        %2460 = vmatpush1.msra.mxu0 0.0
        %2461 = vmatprep.subr.mxu0 0.0
        %2462 = vmatpush1.msra.mxu0 0.0
        %2463 = vmatprep.subr.mxu0 0.0
        %2464 = vmatpush1.msra.mxu0 0.0
        %2465 = vmatprep.subr.mxu0 0.0
        %2466 = vmatpush1.msra.mxu0 0.0
        %2467 = vmatprep.mubr.f32.mxu0 0.0
        %2468 = vmatmul.mubr.f32.gmra.mrb[0].mxu0 %v2320
        %v2469 = vpop.f32.mrb[0].mxu0
        %v2470 = vadd.f32 0.0, %v2469
        %v2471 = vpop.f32.mrb[0].mxu0
        %2472 = vdwg.mxu0
        %v2473 = vmul.f32 %v2399, 0.3
        %v2474 = vmul.f32 %v2401, 0.3
        %v2475 = vmul.f32 %v2470, 0.3
        %v2476 = vadd.f32 %v419, %v2473
        %v2477 = vadd.f32 %v421, %v2474
        %v2478 = vadd.f32 %v460, %v2475
        %2479 = vst [vmem:[%s325] sm:$0xff] %v2476
        %2480 = vst [vmem:[%s325 + $0x8] sm:$0xff] %v2477
        %2481 = vst [vmem:[%s325 + $0x10] sm:$0xff] %v2478
        %s2482 = sand.u32 %s225, 1
        %s2483 = scalar_lea.sflag [#allocation4], %s2482
        %s2484 = sand.u32 %s225, 1
        %s2485 = smul.addr %s2484, 24
        %s2486 = scalar_lea.vmem [#allocation3], %s2485
        // Predicated region
        $region57: #{tpu_custom_call.1} parent=55 // pred_check
          %p2487 = pneg %p235
        $region58: #{tpu_custom_call.1} parent=55 // pred_check_branch
          %2489 = sbr.rel (%p2487) target = $region60
        $region59: #{tpu_custom_call.1} parent=55 // pred_region
          %s2491 = ssub.s32 384, 384
          %2492 = vsyncadd %s2483, %s2491
          %s2493 = smul.addr %s23, 3
          %s2494 = smul.addr %s2493, 128
          %s2495 = scalar_lea.hbm %s9, %s2494
          %s2497 = sshll.u32 %s2486, 4
          %s2498 = int_to_ptr.vmem [resolvable:$true] %s2497
          %2500 = dma.vmem_to_hbm [thread:$0]  %s2498, 384, %s2495, %s2483
        $region60: #{tpu_custom_call.1} parent=55 // pred_fallthru
          _
      $region56: #{tpu_custom_call.1} parent=5 // pred_fallthru
        _
      %p2501 = scmp.le.s32.totalorder 2, %s18
      // Predicated region
      $region61: #{tpu_custom_call.1} parent=5 // pred_check
        %p2502 = pneg %p2501
      $region62: #{tpu_custom_call.1} parent=5 // pred_check_branch
        %2504 = sbr.rel (%p2502) target = $region64
      $region63: #{tpu_custom_call.1} parent=5 // pred_region
        %s2505 = ssub.s32 %s18, 2
        // Predicated region
        $region65: #{tpu_custom_call.1} parent=63 // pred_check
          %p2506 = pneg %p241
        $region66: #{tpu_custom_call.1} parent=63 // pred_check_branch
          %2508 = sbr.rel (%p2506) target = $region68
        $region67: #{tpu_custom_call.1} parent=63 // pred_region
          %s2509 = sand.u32 %s226, 1
          %s2510 = scalar_lea.sflag [#allocation4], %s2509
          %s2511 = sand.u32 %s226, 1
          %s2512 = smul.addr %s2511, 24
          %s2513 = scalar_lea.vmem [#allocation3], %s2512
          %2514 = dma.done %s2510, 384
        $region68: #{tpu_custom_call.1} parent=63 // pred_fallthru
          _
      $region64: #{tpu_custom_call.1} parent=5 // pred_fallthru
        _
    $region6: #{tpu_custom_call.1} parent=1 // loop_footer
      %s22 = sadd.s32 1, %s18
    $region7: #{tpu_custom_call.1} parent=1 // loop_footer_branch
      %17 = sbr.rel target = $region3
    $region8: #{tpu_custom_call.1} parent=1 // loop_exit
      _
    %2515 = vsyncpa [#allocation4], 1
    %s2516 = scalar_lea.sflag [#allocation4], 1
    %2517 = vsyncpa %s2516, 1

</llo_original>
